<compile_context>
chip_gen: v7x
topology: tpu7x:2x2x1
jax: 0.10.0
libtpu: 0.0.40
codegen_flags: <defaults>
</compile_context>

<pallas_src>
import functools

import jax
import jax.numpy as jnp
from jax.experimental import pallas as pl
from jax.experimental.pallas import tpu as pltpu

VISION_FEAT = 1024
TEXT_FEAT = 768
FUSED_FEAT = VISION_FEAT + TEXT_FEAT      # 1792
NUM_CLASSES = 16
LOGITS_PAD = 128                          # lane-dense logits width


def _round_up(x, m):
    return ((x + m - 1) // m) * m


def late_concat_kernel(v_ref, t_ref, wv_ref, bv_ref, wt_ref, bt_ref,
                       wfv_ref, wft_ref, bf_ref,
                       logits_ref, cls_ref, pool_acc,
                       *, inv_hw, inv_s):
    k = pl.program_id(1)

    # ---- init pooled-sum accumulator at the first HW chunk ----
    @pl.when(k == 0)
    def _():
        pool_acc[...] = jnp.zeros_like(pool_acc)

    # ---- synthetic vision backbone: accumulate spatial sum (f32) ----
    pool_acc[...] += jnp.sum(v_ref[...], axis=2, dtype=jnp.float32)      # (TB, C)

    # ---- finalize on the last HW chunk ----
    @pl.when(k == pl.num_programs(1) - 1)
    def _():
        # vision feature head (global mean uses the TRUE H*W, not the chunk)
        v_pool = pool_acc[...] * inv_hw                                   # (TB, C) f32
        vision_feat = (jnp.dot(v_pool.astype(jnp.bfloat16), wv_ref[...],
                               preferred_element_type=jnp.float32)
                       + bv_ref[...])                                     # (TB, 1024) f32

        # synthetic text backbone: sequence mean pool (f32 acc) + bf16 linear
        t_pool = jnp.sum(t_ref[...], axis=1, dtype=jnp.float32) * inv_s   # (TB, D)
        text_feat = (jnp.dot(t_pool.astype(jnp.bfloat16), wt_ref[...],
                             preferred_element_type=jnp.float32)
                     + bt_ref[...])                                       # (TB, 768) f32

        # ---- VisionTextClassifiers.forward_late_concat ----
        # concat_feature emitted as two 128-aligned, unmasked range stores.
        cls_ref[:, :VISION_FEAT] = vision_feat
        cls_ref[:, VISION_FEAT:] = text_feat

        # fusion_head split at the concat boundary: two bf16 dots, f32 acc,
        # one lane-dense (TB, 128) store.
        logits_ref[...] = (
            jnp.dot(vision_feat.astype(jnp.bfloat16), wfv_ref[...],
                    preferred_element_type=jnp.float32)
            + jnp.dot(text_feat.astype(jnp.bfloat16), wft_ref[...],
                      preferred_element_type=jnp.float32)
            + bf_ref[...])


def _select_tiles(B, C, HW, S, D, vmem_cap):
    """Pick (TB, THW) from a VMEM budget; returns (TB, THW, est_bytes)."""
    C_sub = _round_up(C, 16)        # bf16 sublane packing of the vision block
    S_sub = _round_up(S, 16)
    D_lane = _round_up(D, 128)
    HW_lane = _round_up(HW, 128)

    def vmem_need(tb, thw):
        vis = 2 * tb * C_sub * thw * 2                    # double-buffered bf16
        txt = 2 * tb * S_sub * D_lane * 2
        outs = 2 * tb * LOGITS_PAD * 4 + 2 * tb * FUSED_FEAT * 4
        scratch = tb * 128 * 4
        weights = 2 * 2 * (C_sub * VISION_FEAT + D_lane * TEXT_FEAT
                           + VISION_FEAT * LOGITS_PAD + TEXT_FEAT * LOGITS_PAD)
        biases = 2 * 4 * 8 * (VISION_FEAT + TEXT_FEAT + LOGITS_PAD)
        return vis + txt + outs + scratch + weights + biases

    B16 = _round_up(B, 16)
    tb_cap = 256 if vmem_cap >= (96 << 20) else 128       # v5e/v6e vs v7x
    tb_cap = min(tb_cap, B16)
    if B16 >= 32:
        # Keep >= 2 batch tiles so both v7x TensorCores get work.
        tb_cap = min(tb_cap, _round_up(pl.cdiv(B16, 2), 16))

    budget = min(int(vmem_cap * 0.6), 96 << 20)

    TB = max(16, tb_cap)
    while True:
        THW = HW_lane
        while vmem_need(TB, THW) > budget and THW > 128:
            THW = _round_up(THW // 2, 128)
        if vmem_need(TB, THW) <= budget or TB <= 16:
            break
        TB = max(16, TB // 2)
    return TB, THW, vmem_need(TB, THW)


def vision_text_classifier_late_concat(vision_input, text_input, params):
    B, C, H, W = vision_input.shape
    _, S, D = text_input.shape
    HW = H * W

    try:
        vmem_cap = int(pltpu.get_tpu_info().vmem_capacity_bytes)
    except Exception:
        vmem_cap = 64 << 20   # conservative fallback (v7x per-TensorCore)

    TB, THW, need = _select_tiles(B, C, HW, S, D, vmem_cap)
    B_pad = _round_up(B, TB)
    HW_pad = _round_up(HW, THW)
    grid = (B_pad // TB, HW_pad // THW)

    # bf16 activations; zero-pad batch and HW (zeros do not perturb the sums,
    # and the mean divides by the true HW inside the kernel).
    v = vision_input.reshape(B, C, HW).astype(jnp.bfloat16)   # NCHW -> (B, C, HW)
    t = text_input.astype(jnp.bfloat16)
    if B_pad != B or HW_pad != HW:
        v = jnp.pad(v, ((0, B_pad - B), (0, 0), (0, HW_pad - HW)))
    if B_pad != B:
        t = jnp.pad(t, ((0, B_pad - B), (0, 0), (0, 0)))

    # bf16 weights; biases stay f32 (added into the f32 accumulator).
    wv = params["wv"].astype(jnp.bfloat16)
    wt = params["wt"].astype(jnp.bfloat16)
    bv = params["bv"]
    bt = params["bt"]
    # Fusion weight split at the concat boundary, zero-padded to 128 out lanes.
    wf_pad = (jnp.zeros((FUSED_FEAT, LOGITS_PAD), jnp.float32)
              .at[:, :NUM_CLASSES].set(params["wf"]))
    wfv = wf_pad[:VISION_FEAT].astype(jnp.bfloat16)
    wft = wf_pad[VISION_FEAT:].astype(jnp.bfloat16)
    bf = (jnp.zeros((1, LOGITS_PAD), jnp.float32)
          .at[:, :NUM_CLASSES].set(params["bf"]))

    def resident(shape):
        n = len(shape)
        return pl.BlockSpec(shape, lambda i, k, _n=n: (0,) * _n)

    in_specs = [
        pl.BlockSpec((TB, C, THW), lambda i, k: (i, 0, k)),   # vision, HW-tiled
        pl.BlockSpec((TB, S, D), lambda i, k: (i, 0, 0)),     # text, per batch tile
        resident((C, VISION_FEAT)), resident((1, VISION_FEAT)),
        resident((D, TEXT_FEAT)), resident((1, TEXT_FEAT)),
        resident((VISION_FEAT, LOGITS_PAD)), resident((TEXT_FEAT, LOGITS_PAD)),
        resident((1, LOGITS_PAD)),
    ]
    out_specs = (pl.BlockSpec((TB, LOGITS_PAD), lambda i, k: (i, 0)),
                 pl.BlockSpec((TB, FUSED_FEAT), lambda i, k: (i, 0)))
    out_shape = (jax.ShapeDtypeStruct((B_pad, LOGITS_PAD), jnp.float32),
                 jax.ShapeDtypeStruct((B_pad, FUSED_FEAT), jnp.float32))

    vmem_limit = int(min(vmem_cap, max(2 * need, 32 << 20)))

    kernel = functools.partial(late_concat_kernel,
                               inv_hw=1.0 / HW, inv_s=1.0 / S)

    logits_pad, cls_pad = pl.pallas_call(
        kernel,
        grid=grid,
        in_specs=in_specs,
        out_specs=out_specs,
        out_shape=out_shape,
        scratch_shapes=[pltpu.VMEM((TB, C), jnp.float32)],   # pooled-sum accumulator
        compiler_params=pltpu.CompilerParams(
            dimension_semantics=("parallel", "arbitrary"),
            vmem_limit_bytes=vmem_limit),
    )(v, t, wv, bv, wt, bt, wfv, wft, bf)

    logits = logits_pad[:B, :NUM_CLASSES]
    extra_out = {"cls_": cls_pad[:B]}
    return logits, extra_out


def init_params(key, C, D):
    """Deterministic parameter init (uniform +-1/sqrt(fan_in), like nn.Linear)."""
    ks = jax.random.split(key, 3)

    def lin(k, fan_in, fan_out):
        bound = 1.0 / jnp.sqrt(fan_in)
        kw, kb = jax.random.split(k)
        w = jax.random.uniform(kw, (fan_in, fan_out), jnp.float32, -bound, bound)
        b = jax.random.uniform(kb, (1, fan_out), jnp.float32, -bound, bound)
        return w, b

    wv, bv = lin(ks[0], C, VISION_FEAT)                      # vision feature head
    wt, bt = lin(ks[1], D, TEXT_FEAT)                        # text feature head
    wf, bf = lin(ks[2], FUSED_FEAT, NUM_CLASSES)             # fusion_head
    return {"wv": wv, "bv": bv, "wt": wt, "bt": bt, "wf": wf, "bf": bf}


def reference_forward(vision_input, text_input, params):
    """Pure-JAX reference mirroring the kernel's bf16-weights / f32-accumulation math."""
    B, C, H, W = vision_input.shape
    v = vision_input.reshape(B, C, H * W).astype(jnp.bfloat16).astype(jnp.float32)
    v_pool = jnp.mean(v, axis=2)
    vision_feat = (jnp.dot(v_pool.astype(jnp.bfloat16),
                           params["wv"].astype(jnp.bfloat16),
                           preferred_element_type=jnp.float32) + params["bv"])
    t = text_input.astype(jnp.bfloat16).astype(jnp.float32)
    t_pool = jnp.mean(t, axis=1)
    text_feat = (jnp.dot(t_pool.astype(jnp.bfloat16),
                         params["wt"].astype(jnp.bfloat16),
                         preferred_element_type=jnp.float32) + params["bt"])
    concat = jnp.concatenate([vision_feat, text_feat], axis=-1)
    logits = (jnp.dot(concat.astype(jnp.bfloat16),
                      params["wf"].astype(jnp.bfloat16),
                      preferred_element_type=jnp.float32) + params["bf"])
    return logits, concat


if __name__ == "__main__":
    key = jax.random.PRNGKey(0)
    k_v, k_t, k_p = jax.random.split(key, 3)

    B, C, H, W = 2, 4, 16, 16        # vision input, NCHW
    S, D = 8, 32                     # text input, (B, S, D)

    vision_input = jax.random.normal(k_v, (B, C, H, W), jnp.float32)
    text_input = jax.random.normal(k_t, (B, S, D), jnp.float32)
    params = init_params(k_p, C, D)

    logits, extra_out = vision_text_classifier_late_concat(
        vision_input, text_input, params)
    logits = jax.block_until_ready(logits)
    cls_ = jax.block_until_ready(extra_out["cls_"])

    ref_logits, ref_cls = reference_forward(vision_input, text_input, params)
    assert logits.shape == (B, NUM_CLASSES)
    assert cls_.shape == (B, FUSED_FEAT)
    assert jnp.allclose(logits, ref_logits, rtol=1e-2, atol=1e-2)
    assert jnp.allclose(cls_, ref_cls, rtol=1e-2, atol=1e-2)

    print("KERNEL_OK")
</pallas_src>

<mosaic_0001>
module attributes {stable_mosaic.version = 11 : i64} {
  func.func @late_concat_kernel(%arg0: i32, %arg1: i32, %arg2: memref<16x4x256xbf16, #tpu.memory_space<vmem>>, %arg3: memref<16x8x32xbf16, #tpu.memory_space<vmem>>, %arg4: memref<4x1024xbf16, #tpu.memory_space<vmem>>, %arg5: memref<1x1024xf32, #tpu.memory_space<vmem>>, %arg6: memref<32x768xbf16, #tpu.memory_space<vmem>>, %arg7: memref<1x768xf32, #tpu.memory_space<vmem>>, %arg8: memref<1024x128xbf16, #tpu.memory_space<vmem>>, %arg9: memref<768x128xbf16, #tpu.memory_space<vmem>>, %arg10: memref<1x128xf32, #tpu.memory_space<vmem>>, %arg11: memref<16x128xf32, #tpu.memory_space<vmem>>, %arg12: memref<16x1792xf32, #tpu.memory_space<vmem>>, %arg13: memref<16x4xf32, #tpu.memory_space<vmem>>) attributes {dimension_semantics = [#tpu.dimension_semantics<parallel>, #tpu.dimension_semantics<arbitrary>], iteration_bounds = array<i64: 1, 1>, scalar_prefetch = 0 : i64, scratch_operands = 1 : i64, tpu.core_type = #tpu.core_type<tc>, window_params = [{transform_indices = @transform_0, window_bounds = array<i64: 16, 4, 256>}, {transform_indices = @transform_1, window_bounds = array<i64: 16, 8, 32>}, {pipeline_mode = #tpu.pipeline_mode<synchronous>, transform_indices = @transform_2, window_bounds = array<i64: 4, 1024>}, {pipeline_mode = #tpu.pipeline_mode<synchronous>, transform_indices = @transform_3, window_bounds = array<i64: 1, 1024>}, {pipeline_mode = #tpu.pipeline_mode<synchronous>, transform_indices = @transform_4, window_bounds = array<i64: 32, 768>}, {pipeline_mode = #tpu.pipeline_mode<synchronous>, transform_indices = @transform_5, window_bounds = array<i64: 1, 768>}, {pipeline_mode = #tpu.pipeline_mode<synchronous>, transform_indices = @transform_6, window_bounds = array<i64: 1024, 128>}, {pipeline_mode = #tpu.pipeline_mode<synchronous>, transform_indices = @transform_7, window_bounds = array<i64: 768, 128>}, {pipeline_mode = #tpu.pipeline_mode<synchronous>, transform_indices = @transform_8, window_bounds = array<i64: 1, 128>}, {transform_indices = @transform_9, window_bounds = array<i64: 16, 128>}, {transform_indices = @transform_10, window_bounds = array<i64: 16, 1792>}]} {
    %c0_i32 = arith.constant 0 : i32
    %0 = arith.cmpi eq, %arg1, %c0_i32 : i32
    %1 = arith.extui %0 : i1 to i32
    %c0_i32_0 = arith.constant 0 : i32
    %2 = arith.cmpi ne, %1, %c0_i32_0 : i32
    scf.if %2 {
      %cst_9 = arith.constant 0.000000e+00 : f32
      %12 = vector.broadcast %cst_9 : f32 to vector<16x4xf32>
      %c0_10 = arith.constant 0 : index
      %c0_11 = arith.constant 0 : index
      %13 = vector.load %arg13[%c0_10, %c0_11] : memref<16x4xf32, #tpu.memory_space<vmem>>, vector<16x4xf32>
      tpu.vector_store %arg13[%c0_10, %c0_11], %12 {strides = array<i32>} : memref<16x4xf32, #tpu.memory_space<vmem>>, vector<16x4xf32>,
    } else {
    }
    %c0 = arith.constant 0 : index
    %c0_1 = arith.constant 0 : index
    %3 = vector.load %arg13[%c0, %c0_1] : memref<16x4xf32, #tpu.memory_space<vmem>>, vector<16x4xf32>
    %c0_2 = arith.constant 0 : index
    %c0_3 = arith.constant 0 : index
    %c0_4 = arith.constant 0 : index
    %4 = vector.load %arg2[%c0_2, %c0_3, %c0_4] : memref<16x4x256xbf16, #tpu.memory_space<vmem>>, vector<16x4x256xbf16>
    %5 = arith.extf %4 : vector<16x4x256xbf16> to vector<16x4x256xf32>
    %cst = arith.constant dense<0.000000e+00> : vector<16x4xf32>
    %6 = vector.multi_reduction <add>, %5, %cst [2] : vector<16x4x256xf32> to vector<16x4xf32>
    %7 = arith.addf %3, %6 : vector<16x4xf32>
    %c0_5 = arith.constant 0 : index
    %c0_6 = arith.constant 0 : index
    %8 = vector.load %arg13[%c0_5, %c0_6] : memref<16x4xf32, #tpu.memory_space<vmem>>, vector<16x4xf32>
    tpu.vector_store %arg13[%c0_5, %c0_6], %7 {strides = array<i32>} : memref<16x4xf32, #tpu.memory_space<vmem>>, vector<16x4xf32>,
    %c0_i32_7 = arith.constant 0 : i32
    %9 = arith.cmpi eq, %arg1, %c0_i32_7 : i32
    %10 = arith.extui %9 : i1 to i32
    %c0_i32_8 = arith.constant 0 : i32
    %11 = arith.cmpi ne, %10, %c0_i32_8 : i32
    scf.if %11 {
      %c0_9 = arith.constant 0 : index
      %c0_10 = arith.constant 0 : index
      %12 = vector.load %arg13[%c0_9, %c0_10] : memref<16x4xf32, #tpu.memory_space<vmem>>, vector<16x4xf32>
      %cst_11 = arith.constant 3.906250e-03 : f32
      %13 = vector.broadcast %cst_11 : f32 to vector<16x4xf32>
      %14 = arith.mulf %12, %13 : vector<16x4xf32>
      %15 = arith.truncf %14 : vector<16x4xf32> to vector<16x4xbf16>
      %c0_12 = arith.constant 0 : index
      %c0_13 = arith.constant 0 : index
      %16 = vector.load %arg4[%c0_12, %c0_13] : memref<4x1024xbf16, #tpu.memory_space<vmem>>, vector<4x1024xbf16>
      %cst_14 = arith.constant dense<0.000000e+00> : vector<16x1024xf32>
      %17 = tpu.matmul %15, %16, %cst_14 {dimension_numbers = #tpu.dot_dimension_numbers<[1], [0], [0], [1], [0, 0, 1, 1], [], []>} : vector<16x4xbf16>, vector<4x1024xbf16>, vector<16x1024xf32> -> vector<16x1024xf32>
      %c0_15 = arith.constant 0 : index
      %c0_16 = arith.constant 0 : index
      %18 = vector.load %arg5[%c0_15, %c0_16] : memref<1x1024xf32, #tpu.memory_space<vmem>>, vector<1x1024xf32>
      %19 = vector.broadcast %18 : vector<1x1024xf32> to vector<16x1024xf32>
      %20 = arith.addf %17, %19 : vector<16x1024xf32>
      %c0_17 = arith.constant 0 : index
      %c0_18 = arith.constant 0 : index
      %c0_19 = arith.constant 0 : index
      %21 = vector.load %arg3[%c0_17, %c0_18, %c0_19] : memref<16x8x32xbf16, #tpu.memory_space<vmem>>, vector<16x8x32xbf16>
      %22 = arith.extf %21 : vector<16x8x32xbf16> to vector<16x8x32xf32>
      %cst_20 = arith.constant dense<0.000000e+00> : vector<16x32xf32>
      %23 = vector.multi_reduction <add>, %22, %cst_20 [1] : vector<16x8x32xf32> to vector<16x32xf32>
      %cst_21 = arith.constant 1.250000e-01 : f32
      %24 = vector.broadcast %cst_21 : f32 to vector<16x32xf32>
      %25 = arith.mulf %23, %24 : vector<16x32xf32>
      %26 = arith.truncf %25 : vector<16x32xf32> to vector<16x32xbf16>
      %c0_22 = arith.constant 0 : index
      %c0_23 = arith.constant 0 : index
      %27 = vector.load %arg6[%c0_22, %c0_23] : memref<32x768xbf16, #tpu.memory_space<vmem>>, vector<32x768xbf16>
      %cst_24 = arith.constant dense<0.000000e+00> : vector<16x768xf32>
      %28 = tpu.matmul %26, %27, %cst_24 {dimension_numbers = #tpu.dot_dimension_numbers<[1], [0], [0], [1], [0, 0, 1, 1], [], []>} : vector<16x32xbf16>, vector<32x768xbf16>, vector<16x768xf32> -> vector<16x768xf32>
      %c0_25 = arith.constant 0 : index
      %c0_26 = arith.constant 0 : index
      %29 = vector.load %arg7[%c0_25, %c0_26] : memref<1x768xf32, #tpu.memory_space<vmem>>, vector<1x768xf32>
      %30 = vector.broadcast %29 : vector<1x768xf32> to vector<16x768xf32>
      %31 = arith.addf %28, %30 : vector<16x768xf32>
      %c0_27 = arith.constant 0 : index
      %c0_28 = arith.constant 0 : index
      %32 = vector.load %arg12[%c0_27, %c0_28] : memref<16x1792xf32, #tpu.memory_space<vmem>>, vector<16x1024xf32>
      tpu.vector_store %arg12[%c0_27, %c0_28], %20 {strides = array<i32>} : memref<16x1792xf32, #tpu.memory_space<vmem>>, vector<16x1024xf32>,
      %c0_29 = arith.constant 0 : index
      %c1024 = arith.constant 1024 : index
      %33 = vector.load %arg12[%c0_29, %c1024] : memref<16x1792xf32, #tpu.memory_space<vmem>>, vector<16x768xf32>
      tpu.vector_store %arg12[%c0_29, %c1024], %31 {strides = array<i32>} : memref<16x1792xf32, #tpu.memory_space<vmem>>, vector<16x768xf32>,
      %34 = arith.truncf %20 : vector<16x1024xf32> to vector<16x1024xbf16>
      %c0_30 = arith.constant 0 : index
      %c0_31 = arith.constant 0 : index
      %35 = vector.load %arg8[%c0_30, %c0_31] : memref<1024x128xbf16, #tpu.memory_space<vmem>>, vector<1024x128xbf16>
      %cst_32 = arith.constant dense<0.000000e+00> : vector<16x128xf32>
      %36 = tpu.matmul %34, %35, %cst_32 {dimension_numbers = #tpu.dot_dimension_numbers<[1], [0], [0], [1], [0, 0, 1, 1], [], []>} : vector<16x1024xbf16>, vector<1024x128xbf16>, vector<16x128xf32> -> vector<16x128xf32>
      %37 = arith.truncf %31 : vector<16x768xf32> to vector<16x768xbf16>
      %c0_33 = arith.constant 0 : index
      %c0_34 = arith.constant 0 : index
      %38 = vector.load %arg9[%c0_33, %c0_34] : memref<768x128xbf16, #tpu.memory_space<vmem>>, vector<768x128xbf16>
      %cst_35 = arith.constant dense<0.000000e+00> : vector<16x128xf32>
      %39 = tpu.matmul %37, %38, %cst_35 {dimension_numbers = #tpu.dot_dimension_numbers<[1], [0], [0], [1], [0, 0, 1, 1], [], []>} : vector<16x768xbf16>, vector<768x128xbf16>, vector<16x128xf32> -> vector<16x128xf32>
      %40 = arith.addf %36, %39 : vector<16x128xf32>
      %c0_36 = arith.constant 0 : index
      %c0_37 = arith.constant 0 : index
      %41 = vector.load %arg10[%c0_36, %c0_37] : memref<1x128xf32, #tpu.memory_space<vmem>>, vector<1x128xf32>
      %42 = vector.broadcast %41 : vector<1x128xf32> to vector<16x128xf32>
      %43 = arith.addf %40, %42 : vector<16x128xf32>
      %c0_38 = arith.constant 0 : index
      %c0_39 = arith.constant 0 : index
      %44 = vector.load %arg11[%c0_38, %c0_39] : memref<16x128xf32, #tpu.memory_space<vmem>>, vector<16x128xf32>
      tpu.vector_store %arg11[%c0_38, %c0_39], %43 {strides = array<i32>} : memref<16x128xf32, #tpu.memory_space<vmem>>, vector<16x128xf32>,
    } else {
    }
    return
  }
  func.func @transform_0(%arg0: i32, %arg1: i32) -> (i32, i32, i32) {
    %c0_i32 = arith.constant 0 : i32
    %c0_i32_0 = arith.constant 0 : i32
    return %arg0, %c0_i32, %arg1 : i32, i32, i32
  }
  func.func @transform_1(%arg0: i32, %arg1: i32) -> (i32, i32, i32) {
    %c0_i32 = arith.constant 0 : i32
    %c0_i32_0 = arith.constant 0 : i32
    %c0_i32_1 = arith.constant 0 : i32
    return %arg0, %c0_i32, %c0_i32_0 : i32, i32, i32
  }
  func.func @transform_2(%arg0: i32, %arg1: i32) -> (i32, i32) {
    %c0_i32 = arith.constant 0 : i32
    %c0_i32_0 = arith.constant 0 : i32
    %c0_i32_1 = arith.constant 0 : i32
    return %c0_i32, %c0_i32_0 : i32, i32
  }
  func.func @transform_3(%arg0: i32, %arg1: i32) -> (i32, i32) {
    %c0_i32 = arith.constant 0 : i32
    %c0_i32_0 = arith.constant 0 : i32
    %c0_i32_1 = arith.constant 0 : i32
    return %c0_i32, %c0_i32_0 : i32, i32
  }
  func.func @transform_4(%arg0: i32, %arg1: i32) -> (i32, i32) {
    %c0_i32 = arith.constant 0 : i32
    %c0_i32_0 = arith.constant 0 : i32
    %c0_i32_1 = arith.constant 0 : i32
    return %c0_i32, %c0_i32_0 : i32, i32
  }
  func.func @transform_5(%arg0: i32, %arg1: i32) -> (i32, i32) {
    %c0_i32 = arith.constant 0 : i32
    %c0_i32_0 = arith.constant 0 : i32
    %c0_i32_1 = arith.constant 0 : i32
    return %c0_i32, %c0_i32_0 : i32, i32
  }
  func.func @transform_6(%arg0: i32, %arg1: i32) -> (i32, i32) {
    %c0_i32 = arith.constant 0 : i32
    %c0_i32_0 = arith.constant 0 : i32
    %c0_i32_1 = arith.constant 0 : i32
    return %c0_i32, %c0_i32_0 : i32, i32
  }
  func.func @transform_7(%arg0: i32, %arg1: i32) -> (i32, i32) {
    %c0_i32 = arith.constant 0 : i32
    %c0_i32_0 = arith.constant 0 : i32
    %c0_i32_1 = arith.constant 0 : i32
    return %c0_i32, %c0_i32_0 : i32, i32
  }
  func.func @transform_8(%arg0: i32, %arg1: i32) -> (i32, i32) {
    %c0_i32 = arith.constant 0 : i32
    %c0_i32_0 = arith.constant 0 : i32
    %c0_i32_1 = arith.constant 0 : i32
    return %c0_i32, %c0_i32_0 : i32, i32
  }
  func.func @transform_9(%arg0: i32, %arg1: i32) -> (i32, i32) {
    %c0_i32 = arith.constant 0 : i32
    %c0_i32_0 = arith.constant 0 : i32
    return %arg0, %c0_i32 : i32, i32
  }
  func.func @transform_10(%arg0: i32, %arg1: i32) -> (i32, i32) {
    %c0_i32 = arith.constant 0 : i32
    %c0_i32_0 = arith.constant 0 : i32
    return %arg0, %c0_i32 : i32, i32
  }
}

</mosaic_0001>

<llo_original>
// kernel: tpu_custom_call.1
$region0: #{tpu_custom_call.1}
  #allocation0 [shape = 'u32[]', space=smem, size = 0x4, offset = 0x4, fixed_abs, tag = 'smem constant byte address 0x4 - core index']
  #allocation1 [shape = 'u32[144,128]{1,0:T(1,128)}', space=vmem, size = 0x12000, scoped, tag = 'internal scratch']
  #allocation2 [shape = 'f32[16,4]{1,0:T(8,128)}', space=vmem, size = 0x2000, scoped, tag = 'scratch operand']
  %s0 = inlined_call_operand.hbm [shape: bf16[16,4,256], index: 0, kind: input, shape index: {}]
  %s1 = inlined_call_operand.hbm [shape: bf16[16,8,32], index: 1, kind: input, shape index: {}]
  %s2 = inlined_call_operand.hbm [shape: bf16[4,1024], index: 2, kind: input, shape index: {}]
  %s3 = inlined_call_operand.vmem [shape: f32[1,1024], index: 3, kind: input, shape index: {}]
  %s4 = inlined_call_operand.hbm [shape: bf16[32,768], index: 4, kind: input, shape index: {}]
  %s5 = inlined_call_operand.vmem [shape: f32[1,768], index: 5, kind: input, shape index: {}]
  %s6 = inlined_call_operand.hbm [shape: bf16[1024,128], index: 6, kind: input, shape index: {}]
  %s7 = inlined_call_operand.hbm [shape: bf16[768,128], index: 7, kind: input, shape index: {}]
  %s8 = inlined_call_operand.vmem [shape: f32[1,128], index: 8, kind: input, shape index: {}]
  %s9 = inlined_call_operand.hbm [shape: f32[16,128], index: 9, kind: output, shape index: {0}]
  %s10 = inlined_call_operand.hbm [shape: f32[16,1792], index: 10, kind: output, shape index: {1}]
  %11 = xla_tuple %s9, %s10
  %s12 = sld [smem:[#allocation0]]
  $region86: #{tpu_custom_call.1} parent=0
    _
  %s14 = ssub.s32 1, %s12
  %s15 = scalar_select 0, %s14, %s12
  $region1: #{tpu_custom_call.1} parent=0
    #allocation3 [shape = 'u8[32768]{0}', space=vmem, size = 0x8000, scoped, tag = 'input window, operand 0, single buffered']
    #allocation4 [shape = 's32[1]{0}', space=sflag, size = 0x4, scoped, tag = 'scoped memory for tpu_custom_call.1']
    #allocation5 [shape = 's32[1]{0}', space=sflag, size = 0x4, scoped, tag = 'scoped memory for tpu_custom_call.1']
    #allocation6 [shape = 'u8[32768]{0}', space=vmem, size = 0x8000, scoped, tag = 'input window, operand 1, single buffered']
    #allocation7 [shape = 's32[1]{0}', space=sflag, size = 0x4, scoped, tag = 'scoped memory for tpu_custom_call.1']
    #allocation8 [shape = 'u8[8192]{0}', space=vmem, size = 0x2000, scoped, tag = 'input window, operand 2, single buffered']
    #allocation9 [shape = 'u8[49152]{0}', space=vmem, size = 0xc000, scoped, tag = 'input window, operand 4, single buffered']
    #allocation10 [shape = 's32[1]{0}', space=sflag, size = 0x4, scoped, tag = 'scoped memory for tpu_custom_call.1']
    #allocation11 [shape = 'u8[262144]{0}', space=vmem, size = 0x40000, scoped, tag = 'input window, operand 6, single buffered']
    #allocation12 [shape = 'u8[196608]{0}', space=vmem, size = 0x30000, scoped, tag = 'input window, operand 7, single buffered']
    #allocation13 [shape = 's32[1]{0}', space=sflag, size = 0x4, scoped, tag = 'scoped memory for tpu_custom_call.1']
    #allocation14 [shape = 'u8[8192]{0}', space=vmem, size = 0x2000, scoped, tag = 'output window, operand 0, single buffered']
    #allocation15 [shape = 'u8[114688]{0}', space=vmem, size = 0x1c000, scoped, tag = 'output window, operand 1, single buffered']
    #allocation16 [shape = 's32[1]{0}', space=sflag, size = 0x4, scoped, tag = 'scoped memory for tpu_custom_call.1']
    %16 = vsyncpa [#allocation4], 0
    %17 = vsyncpa [#allocation7], 0
    %18 = vsyncpa [#allocation10], 0
    %19 = vsyncpa [#allocation13], 0
    %20 = vsyncpa [#allocation5], 0
    %21 = vsyncpa [#allocation16], 0
    // Predicated region
    $region2: #{tpu_custom_call.1} parent=1 // pred_check
      _
    $region3: #{tpu_custom_call.1} parent=1 // pred_check_branch
      %23 = sbr.rel (0) target = $region5
    $region4: #{tpu_custom_call.1} parent=1 // pred_region
      %s25 = ssub.s32 1024, 1024
      %26 = vsyncadd [#allocation4], %s25
      %s27 = sshll.u32 [#allocation3], 4
      %s28 = int_to_ptr.vmem [resolvable:$true] %s27
      %33 = dma.hbm_to_vmem [thread:$0]  %s0, 1024, %s28, [#allocation4], 64, 64, 4
    $region5: #{tpu_custom_call.1} parent=1 // pred_fallthru
      _
    // Predicated region
    $region6: #{tpu_custom_call.1} parent=1 // pred_check
      _
    $region7: #{tpu_custom_call.1} parent=1 // pred_check_branch
      %35 = sbr.rel (0) target = $region9
    $region8: #{tpu_custom_call.1} parent=1 // pred_region
      %s37 = ssub.s32 1024, 1024
      %38 = vsyncadd [#allocation7], %s37
      %s39 = sshll.u32 [#allocation6], 4
      %s40 = int_to_ptr.vmem [resolvable:$true] %s39
      %45 = dma.hbm_to_vmem [thread:$0]  %s1, 1024, %s40, [#allocation7], 64, 64, 4
    $region9: #{tpu_custom_call.1} parent=1 // pred_fallthru
      _
    // Predicated region
    $region10: #{tpu_custom_call.1} parent=1 // pred_check
      _
    $region11: #{tpu_custom_call.1} parent=1 // pred_check_branch
      %47 = sbr.rel (0) target = $region13
    $region12: #{tpu_custom_call.1} parent=1 // pred_region
      %s49 = ssub.s32 256, 256
      %50 = vsyncadd [#allocation7], %s49
      %s52 = sshll.u32 [#allocation8], 4
      %s53 = int_to_ptr.vmem [resolvable:$true] %s52
      %55 = dma.hbm_to_vmem [thread:$0]  %s2, 256, %s53, [#allocation7]
    $region13: #{tpu_custom_call.1} parent=1 // pred_fallthru
      _
    // Predicated region
    $region14: #{tpu_custom_call.1} parent=1 // pred_check
      _
    $region15: #{tpu_custom_call.1} parent=1 // pred_check_branch
      %57 = sbr.rel (0) target = $region17
    $region16: #{tpu_custom_call.1} parent=1 // pred_region
      _
    $region17: #{tpu_custom_call.1} parent=1 // pred_fallthru
      _
    // Predicated region
    $region18: #{tpu_custom_call.1} parent=1 // pred_check
      _
    $region19: #{tpu_custom_call.1} parent=1 // pred_check_branch
      %59 = sbr.rel (0) target = $region21
    $region20: #{tpu_custom_call.1} parent=1 // pred_region
      %s61 = ssub.s32 1536, 1536
      %62 = vsyncadd [#allocation10], %s61
      %s63 = sshll.u32 [#allocation9], 4
      %s64 = int_to_ptr.vmem [resolvable:$true] %s63
      %69 = dma.hbm_to_vmem [thread:$0]  %s4, 1536, %s64, [#allocation10], 384, 384, 24
    $region21: #{tpu_custom_call.1} parent=1 // pred_fallthru
      _
    // Predicated region
    $region22: #{tpu_custom_call.1} parent=1 // pred_check
      _
    $region23: #{tpu_custom_call.1} parent=1 // pred_check_branch
      %71 = sbr.rel (0) target = $region25
    $region24: #{tpu_custom_call.1} parent=1 // pred_region
      _
    $region25: #{tpu_custom_call.1} parent=1 // pred_fallthru
      _
    // Predicated region
    $region26: #{tpu_custom_call.1} parent=1 // pred_check
      _
    $region27: #{tpu_custom_call.1} parent=1 // pred_check_branch
      %73 = sbr.rel (0) target = $region29
    $region28: #{tpu_custom_call.1} parent=1 // pred_region
      %s75 = ssub.s32 8192, 8192
      %76 = vsyncadd [#allocation10], %s75
      %s77 = sshll.u32 [#allocation11], 4
      %s78 = int_to_ptr.vmem [resolvable:$true] %s77
      %83 = dma.hbm_to_vmem [thread:$0]  %s6, 8192, %s78, [#allocation10], 64, 64, 4
    $region29: #{tpu_custom_call.1} parent=1 // pred_fallthru
      _
    // Predicated region
    $region30: #{tpu_custom_call.1} parent=1 // pred_check
      _
    $region31: #{tpu_custom_call.1} parent=1 // pred_check_branch
      %85 = sbr.rel (0) target = $region33
    $region32: #{tpu_custom_call.1} parent=1 // pred_region
      %s87 = ssub.s32 6144, 6144
      %88 = vsyncadd [#allocation13], %s87
      %s89 = sshll.u32 [#allocation12], 4
      %s90 = int_to_ptr.vmem [resolvable:$true] %s89
      %95 = dma.hbm_to_vmem [thread:$0]  %s7, 6144, %s90, [#allocation13], 64, 64, 4
    $region33: #{tpu_custom_call.1} parent=1 // pred_fallthru
      _
    // Predicated region
    $region34: #{tpu_custom_call.1} parent=1 // pred_check
      _
    $region35: #{tpu_custom_call.1} parent=1 // pred_check_branch
      %97 = sbr.rel (0) target = $region37
    $region36: #{tpu_custom_call.1} parent=1 // pred_region
      _
    $region37: #{tpu_custom_call.1} parent=1 // pred_fallthru
      _
    // Predicated region
    $region38: #{tpu_custom_call.1} parent=1 // pred_check
      _
    $region39: #{tpu_custom_call.1} parent=1 // pred_check_branch
      %99 = sbr.rel (0) target = $region41
    $region40: #{tpu_custom_call.1} parent=1 // pred_region
      %100 = dma.done [#allocation4], 1024
    $region41: #{tpu_custom_call.1} parent=1 // pred_fallthru
      _
    // Predicated region
    $region42: #{tpu_custom_call.1} parent=1 // pred_check
      _
    $region43: #{tpu_custom_call.1} parent=1 // pred_check_branch
      %102 = sbr.rel (0) target = $region45
    $region44: #{tpu_custom_call.1} parent=1 // pred_region
      %103 = dma.done [#allocation7], 1024
    $region45: #{tpu_custom_call.1} parent=1 // pred_fallthru
      _
    // Predicated region
    $region46: #{tpu_custom_call.1} parent=1 // pred_check
      _
    $region47: #{tpu_custom_call.1} parent=1 // pred_check_branch
      %105 = sbr.rel (0) target = $region49
    $region48: #{tpu_custom_call.1} parent=1 // pred_region
      %106 = dma.done [#allocation7], 256
    $region49: #{tpu_custom_call.1} parent=1 // pred_fallthru
      _
    // Predicated region
    $region50: #{tpu_custom_call.1} parent=1 // pred_check
      _
    $region51: #{tpu_custom_call.1} parent=1 // pred_check_branch
      %108 = sbr.rel (0) target = $region53
    $region52: #{tpu_custom_call.1} parent=1 // pred_region
      %109 = dma.done [#allocation10], 1536
    $region53: #{tpu_custom_call.1} parent=1 // pred_fallthru
      _
    // Predicated region
    $region54: #{tpu_custom_call.1} parent=1 // pred_check
      _
    $region55: #{tpu_custom_call.1} parent=1 // pred_check_branch
      %111 = sbr.rel (0) target = $region57
    $region56: #{tpu_custom_call.1} parent=1 // pred_region
      %112 = dma.done [#allocation10], 8192
    $region57: #{tpu_custom_call.1} parent=1 // pred_fallthru
      _
    // Predicated region
    $region58: #{tpu_custom_call.1} parent=1 // pred_check
      _
    $region59: #{tpu_custom_call.1} parent=1 // pred_check_branch
      %114 = sbr.rel (0) target = $region61
    $region60: #{tpu_custom_call.1} parent=1 // pred_region
      %115 = dma.done [#allocation13], 6144
    $region61: #{tpu_custom_call.1} parent=1 // pred_fallthru
      _
    %p117 = scmp.eq.s32.totalorder 0, 0
    // Predicated region
    $region62: #{tpu_custom_call.1} parent=1 // pred_check
      %p118 = pneg %p117
    $region63: #{tpu_custom_call.1} parent=1 // pred_check_branch
      %120 = sbr.rel (%p118) target = $region65
    $region64: #{tpu_custom_call.1} parent=1 // pred_region
      %vm121 = vcmask 31744
      %122 = vst.msk [vmem:[#allocation2] sm:$0xff] %vm121, 0.0
      %123 = vst.msk [vmem:[#allocation2 + $0x8] sm:$0xff] %vm121, 0.0
    $region65: #{tpu_custom_call.1} parent=1 // pred_fallthru
      _
    %v124 = vld [vmem:[#allocation2] sm:$0xff]
    %v125 = vld [vmem:[#allocation2 + $0x8] sm:$0xff]
    %v126 = vld [vmem:[#allocation3] sm:$0xf]
    %v127 = vld [vmem:[#allocation3 + $0x4] sm:$0xf]
    %v128 = vld [vmem:[#allocation3 + $0x8] sm:$0xf]
    %v129 = vld [vmem:[#allocation3 + $0xc] sm:$0xf]
    %v130 = vld [vmem:[#allocation3 + $0x10] sm:$0xf]
    %v131 = vld [vmem:[#allocation3 + $0x14] sm:$0xf]
    %v132 = vld [vmem:[#allocation3 + $0x18] sm:$0xf]
    %v133 = vld [vmem:[#allocation3 + $0x1c] sm:$0xf]
    %v134 = vld [vmem:[#allocation3 + $0x20] sm:$0xf]
    %v135 = vld [vmem:[#allocation3 + $0x24] sm:$0xf]
    %v136 = vld [vmem:[#allocation3 + $0x28] sm:$0xf]
    %v137 = vld [vmem:[#allocation3 + $0x2c] sm:$0xf]
    %v138 = vld [vmem:[#allocation3 + $0x30] sm:$0xf]
    %v139 = vld [vmem:[#allocation3 + $0x34] sm:$0xf]
    %v140 = vld [vmem:[#allocation3 + $0x38] sm:$0xf]
    %v141 = vld [vmem:[#allocation3 + $0x3c] sm:$0xf]
    %v142 = vunpack.c.l.bf16 %v126
    %v143 = vunpack.c.l.bf16 %v127
    %v144 = vunpack.c.l.bf16 %v128
    %v145 = vunpack.c.l.bf16 %v129
    %v146 = vunpack.c.l.bf16 %v130
    %v147 = vunpack.c.l.bf16 %v131
    %v148 = vunpack.c.l.bf16 %v132
    %v149 = vunpack.c.l.bf16 %v133
    %v150 = vunpack.c.l.bf16 %v134
    %v151 = vunpack.c.l.bf16 %v135
    %v152 = vunpack.c.l.bf16 %v136
    %v153 = vunpack.c.l.bf16 %v137
    %v154 = vunpack.c.l.bf16 %v138
    %v155 = vunpack.c.l.bf16 %v139
    %v156 = vunpack.c.l.bf16 %v140
    %v157 = vunpack.c.l.bf16 %v141
    %v174 = vcombine.high %v142, %v142
    %v175 = vcombine.high %v143, %v143
    %v176 = vcombine.high %v144, %v144
    %v177 = vcombine.high %v145, %v145
    %v178 = vcombine.high %v146, %v146
    %v179 = vcombine.high %v147, %v147
    %v180 = vcombine.high %v148, %v148
    %v181 = vcombine.high %v149, %v149
    %v182 = vcombine.high %v150, %v150
    %v183 = vcombine.high %v151, %v151
    %v184 = vcombine.high %v152, %v152
    %v185 = vcombine.high %v153, %v153
    %v186 = vcombine.high %v154, %v154
    %v187 = vcombine.high %v155, %v155
    %v188 = vcombine.high %v156, %v156
    %v189 = vcombine.high %v157, %v157
    %vm206 = vcmask 1043456
    %v207 = vsel %vm206, %v142, 0.0
    %v208 = vsel %vm206, %v174, 0.0
    %v209 = vadd.f32 %v207, %v208
    %210 = vadd.xlane.f32.xlu0 %v209
    %v211 = vpop.xlane.xlu0 %210
    %v212 = vsel %vm206, %v143, 0.0
    %v213 = vsel %vm206, %v175, 0.0
    %v214 = vadd.f32 %v212, %v213
    %215 = vadd.xlane.f32.xlu0 %v214
    %v216 = vpop.xlane.xlu0 %215
    %v217 = vsel %vm206, %v144, 0.0
    %v218 = vsel %vm206, %v176, 0.0
    %v219 = vadd.f32 %v217, %v218
    %220 = vadd.xlane.f32.xlu0 %v219
    %v221 = vpop.xlane.xlu0 %220
    %v222 = vsel %vm206, %v145, 0.0
    %v223 = vsel %vm206, %v177, 0.0
    %v224 = vadd.f32 %v222, %v223
    %225 = vadd.xlane.f32.xlu0 %v224
    %v226 = vpop.xlane.xlu0 %225
    %v227 = vsel %vm206, %v146, 0.0
    %v228 = vsel %vm206, %v178, 0.0
    %v229 = vadd.f32 %v227, %v228
    %230 = vadd.xlane.f32.xlu0 %v229
    %v231 = vpop.xlane.xlu0 %230
    %v232 = vsel %vm206, %v147, 0.0
    %v233 = vsel %vm206, %v179, 0.0
    %v234 = vadd.f32 %v232, %v233
    %235 = vadd.xlane.f32.xlu0 %v234
    %v236 = vpop.xlane.xlu0 %235
    %v237 = vsel %vm206, %v148, 0.0
    %v238 = vsel %vm206, %v180, 0.0
    %v239 = vadd.f32 %v237, %v238
    %240 = vadd.xlane.f32.xlu0 %v239
    %v241 = vpop.xlane.xlu0 %240
    %v242 = vsel %vm206, %v149, 0.0
    %v243 = vsel %vm206, %v181, 0.0
    %v244 = vadd.f32 %v242, %v243
    %245 = vadd.xlane.f32.xlu0 %v244
    %v246 = vpop.xlane.xlu0 %245
    %v247 = vsel %vm206, %v150, 0.0
    %v248 = vsel %vm206, %v182, 0.0
    %v249 = vadd.f32 %v247, %v248
    %250 = vadd.xlane.f32.xlu0 %v249
    %v251 = vpop.xlane.xlu0 %250
    %v252 = vsel %vm206, %v151, 0.0
    %v253 = vsel %vm206, %v183, 0.0
    %v254 = vadd.f32 %v252, %v253
    %255 = vadd.xlane.f32.xlu0 %v254
    %v256 = vpop.xlane.xlu0 %255
    %v257 = vsel %vm206, %v152, 0.0
    %v258 = vsel %vm206, %v184, 0.0
    %v259 = vadd.f32 %v257, %v258
    %260 = vadd.xlane.f32.xlu0 %v259
    %v261 = vpop.xlane.xlu0 %260
    %v262 = vsel %vm206, %v153, 0.0
    %v263 = vsel %vm206, %v185, 0.0
    %v264 = vadd.f32 %v262, %v263
    %265 = vadd.xlane.f32.xlu0 %v264
    %v266 = vpop.xlane.xlu0 %265
    %v267 = vsel %vm206, %v154, 0.0
    %v268 = vsel %vm206, %v186, 0.0
    %v269 = vadd.f32 %v267, %v268
    %270 = vadd.xlane.f32.xlu0 %v269
    %v271 = vpop.xlane.xlu0 %270
    %v272 = vsel %vm206, %v155, 0.0
    %v273 = vsel %vm206, %v187, 0.0
    %v274 = vadd.f32 %v272, %v273
    %275 = vadd.xlane.f32.xlu0 %v274
    %v276 = vpop.xlane.xlu0 %275
    %v277 = vsel %vm206, %v156, 0.0
    %v278 = vsel %vm206, %v188, 0.0
    %v279 = vadd.f32 %v277, %v278
    %280 = vadd.xlane.f32.xlu0 %v279
    %v281 = vpop.xlane.xlu0 %280
    %v282 = vsel %vm206, %v157, 0.0
    %v283 = vsel %vm206, %v189, 0.0
    %v284 = vadd.f32 %v282, %v283
    %285 = vadd.xlane.f32.xlu0 %v284
    %v286 = vpop.xlane.xlu0 %285
    %v303 = vlaneseq
    %v304 = vand.u32 %v303, 127
    %v305 = vlaneseq
    %v306 = vshrl.u32 %v305, 7
    %v307 = vsub.s32 %v304, %v306
    %v308 = vrot.slane %v211, %v307
    %v309 = vlaneseq
    %v310 = vshrl.u32 %v309, 7
    %v311 = vsub.s32 %v304, %v310
    %v312 = vrot.slane %v216, %v311
    %v313 = vlaneseq
    %v314 = vshrl.u32 %v313, 7
    %v315 = vsub.s32 %v304, %v314
    %v316 = vrot.slane %v221, %v315
    %v317 = vlaneseq
    %v318 = vshrl.u32 %v317, 7
    %v319 = vsub.s32 %v304, %v318
    %v320 = vrot.slane %v226, %v319
    %v321 = vlaneseq
    %v322 = vshrl.u32 %v321, 7
    %v323 = vsub.s32 %v304, %v322
    %v324 = vrot.slane %v231, %v323
    %v325 = vlaneseq
    %v326 = vshrl.u32 %v325, 7
    %v327 = vsub.s32 %v304, %v326
    %v328 = vrot.slane %v236, %v327
    %v329 = vlaneseq
    %v330 = vshrl.u32 %v329, 7
    %v331 = vsub.s32 %v304, %v330
    %v332 = vrot.slane %v241, %v331
    %v333 = vlaneseq
    %v334 = vshrl.u32 %v333, 7
    %v335 = vsub.s32 %v304, %v334
    %v336 = vrot.slane %v246, %v335
    %v337 = vlaneseq
    %v338 = vshrl.u32 %v337, 7
    %v339 = vsub.s32 %v304, %v338
    %v340 = vrot.slane %v251, %v339
    %v341 = vlaneseq
    %v342 = vshrl.u32 %v341, 7
    %v343 = vsub.s32 %v304, %v342
    %v344 = vrot.slane %v256, %v343
    %v345 = vlaneseq
    %v346 = vshrl.u32 %v345, 7
    %v347 = vsub.s32 %v304, %v346
    %v348 = vrot.slane %v261, %v347
    %v349 = vlaneseq
    %v350 = vshrl.u32 %v349, 7
    %v351 = vsub.s32 %v304, %v350
    %v352 = vrot.slane %v266, %v351
    %v353 = vlaneseq
    %v354 = vshrl.u32 %v353, 7
    %v355 = vsub.s32 %v304, %v354
    %v356 = vrot.slane %v271, %v355
    %v357 = vlaneseq
    %v358 = vshrl.u32 %v357, 7
    %v359 = vsub.s32 %v304, %v358
    %v360 = vrot.slane %v276, %v359
    %v361 = vlaneseq
    %v362 = vshrl.u32 %v361, 7
    %v363 = vsub.s32 %v304, %v362
    %v364 = vrot.slane %v281, %v363
    %v365 = vlaneseq
    %v366 = vshrl.u32 %v365, 7
    %v367 = vsub.s32 %v304, %v366
    %v368 = vrot.slane %v286, %v367
    %vm369 = vcmask 1041409
    %v370 = vsel %vm369, %v312, %v308
    %vm371 = vcmask 1042434
    %v372 = vsel %vm371, %v316, %v370
    %vm373 = vcmask 1043459
    %v374 = vsel %vm373, %v320, %v372
    %vm375 = vcmask 1044484
    %v376 = vsel %vm375, %v324, %v374
    %vm377 = vcmask 1045509
    %v378 = vsel %vm377, %v328, %v376
    %vm379 = vcmask 1046534
    %v380 = vsel %vm379, %v332, %v378
    %vm381 = vcmask 1047559
    %v382 = vsel %vm381, %v336, %v380
    %v383 = vsel %vm369, %v344, %v340
    %v384 = vsel %vm371, %v348, %v383
    %v385 = vsel %vm373, %v352, %v384
    %v386 = vsel %vm375, %v356, %v385
    %v387 = vsel %vm377, %v360, %v386
    %v388 = vsel %vm379, %v364, %v387
    %v389 = vsel %vm381, %v368, %v388
    %v392 = vadd.f32 %v124, %v382
    %v393 = vadd.f32 %v125, %v389
    %vm394 = vcmask 31744
    %395 = vst.msk [vmem:[#allocation2] sm:$0xff] %vm394, %v392
    %396 = vst.msk [vmem:[#allocation2 + $0x8] sm:$0xff] %vm394, %v393
    // Predicated region
    $region66: #{tpu_custom_call.1} parent=1 // pred_check
      %p397 = pneg %p117
    $region67: #{tpu_custom_call.1} parent=1 // pred_check_branch
      %399 = sbr.rel (%p397) target = $region69
    $region68: #{tpu_custom_call.1} parent=1 // pred_region
      %v400 = vld [vmem:[#allocation2] sm:$0xff]
      %v401 = vld [vmem:[#allocation2 + $0x8] sm:$0xff]
      %v402 = vmul.f32 %v400, 0.00390625
      %v403 = vmul.f32 %v401, 0.00390625
      %v404 = vpack.c.bf16 %v403, %v402
      %v405 = vld [vmem:[#allocation8] sm:$0xff]
      %v406 = vld [vmem:[#allocation8 + $0x8] sm:$0xff]
      %v407 = vld [vmem:[%s3] sm:$0xff]
      %v409 = vlaneseq
      %v410 = vshrl.u32 %v409, 7
      %v411 = vsub.s32 0, %v410
      %v412 = vrot.slane %v407, %v411
      %v413 = vlaneseq
      %v414 = vshrl.u32 %v413, 7
      %v415 = vsub.s32 1, %v414
      %v416 = vrot.slane %v407, %v415
      %v417 = vlaneseq
      %v418 = vshrl.u32 %v417, 7
      %v419 = vsub.s32 2, %v418
      %v420 = vrot.slane %v407, %v419
      %v421 = vlaneseq
      %v422 = vshrl.u32 %v421, 7
      %v423 = vsub.s32 3, %v422
      %v424 = vrot.slane %v407, %v423
      %v425 = vlaneseq
      %v426 = vshrl.u32 %v425, 7
      %v427 = vsub.s32 4, %v426
      %v428 = vrot.slane %v407, %v427
      %v429 = vlaneseq
      %v430 = vshrl.u32 %v429, 7
      %v431 = vsub.s32 5, %v430
      %v432 = vrot.slane %v407, %v431
      %v433 = vlaneseq
      %v434 = vshrl.u32 %v433, 7
      %v435 = vsub.s32 6, %v434
      %v436 = vrot.slane %v407, %v435
      %v437 = vlaneseq
      %v438 = vshrl.u32 %v437, 7
      %v439 = vsub.s32 7, %v438
      %v440 = vrot.slane %v407, %v439
      %v451 = vcombine.high %v405, %v405
      %v453 = vunpack.c.l.s4 1983009808
      %v454 = vunpack.c.0.s8 %v453
      %v455 = vlaneseq
      %v456 = vshrl.u32 %v455, 7
      %v457 = vsub.s32 %v454, %v456
      %v458 = vrot.slane %v405, %v457
      %v460 = vunpack.c.l.s4 1983009808
      %v461 = vunpack.c.0.s8 %v460
      %v462 = vlaneseq
      %v463 = vshrl.u32 %v462, 7
      %v464 = vsub.s32 %v461, %v463
      %v465 = vrot.slane %v451, %v464
      %v466 = vcombine.high %v458, %v458
      %v467 = vcombine.high %v465, %v465
      %v468 = vcombine.high %v406, %v406
      %v470 = vunpack.c.l.s4 1983009808
      %v471 = vunpack.c.0.s8 %v470
      %v472 = vlaneseq
      %v473 = vshrl.u32 %v472, 7
      %v474 = vsub.s32 %v471, %v473
      %v475 = vrot.slane %v406, %v474
      %v477 = vunpack.c.l.s4 1983009808
      %v478 = vunpack.c.0.s8 %v477
      %v479 = vlaneseq
      %v480 = vshrl.u32 %v479, 7
      %v481 = vsub.s32 %v478, %v480
      %v482 = vrot.slane %v468, %v481
      %v483 = vcombine.high %v475, %v475
      %v484 = vcombine.high %v482, %v482
      %v486 = vsel %vm394, %v404, 0
      %vm488 = vcmask 1041408
      %v490 = vsel %vm488, %v458, 0
      %v493 = vsel %vm488, %v466, 0
      %v496 = vsel %vm488, %v465, 0
      %v499 = vsel %vm488, %v467, 0
      %v502 = vsel %vm488, %v475, 0
      %v505 = vsel %vm488, %v483, 0
      %v508 = vsel %vm488, %v482, 0
      %v511 = vsel %vm488, %v484, 0
      %513 = vmatprep.subr.bf16.mxu0 %v493
      %514 = vmatpush1.bf16.msra.mxu0 %v490
      %515 = vmatprep.subr.bf16.mxu0 0
      %516 = vmatpush1.bf16.msra.mxu0 0
      %517 = vmatprep.subr.bf16.mxu0 0
      %518 = vmatpush1.bf16.msra.mxu0 0
      %519 = vmatprep.subr.bf16.mxu0 0
      %520 = vmatpush1.bf16.msra.mxu0 0
      %521 = vmatprep.subr.bf16.mxu0 0
      %522 = vmatpush1.bf16.msra.mxu0 0
      %523 = vmatprep.subr.bf16.mxu0 0
      %524 = vmatpush1.bf16.msra.mxu0 0
      %525 = vmatprep.subr.bf16.mxu0 0
      %526 = vmatpush1.bf16.msra.mxu0 0
      %527 = vmatprep.subr.bf16.mxu0 0
      %528 = vmatpush1.bf16.msra.mxu0 0
      %529 = vmatprep.subr.bf16.mxu0 0
      %530 = vmatpush1.bf16.msra.mxu0 0
      %531 = vmatprep.subr.bf16.mxu0 0
      %532 = vmatpush1.bf16.msra.mxu0 0
      %533 = vmatprep.subr.bf16.mxu0 0
      %534 = vmatpush1.bf16.msra.mxu0 0
      %535 = vmatprep.subr.bf16.mxu0 0
      %536 = vmatpush1.bf16.msra.mxu0 0
      %537 = vmatprep.subr.bf16.mxu0 0
      %538 = vmatpush1.bf16.msra.mxu0 0
      %539 = vmatprep.subr.bf16.mxu0 0
      %540 = vmatpush1.bf16.msra.mxu0 0
      %541 = vmatprep.subr.bf16.mxu0 0
      %542 = vmatpush1.bf16.msra.mxu0 0
      %543 = vmatprep.subr.bf16.mxu0 0
      %544 = vmatpush1.bf16.msra.mxu0 0
      %545 = vmatprep.mubr.bf16.mxu0 0
      %546 = vmatmul.mubr.bf16.gmra.mrb[0].mxu0 %v486
      %v547 = vpop.f32.mrb[0].mxu0
      %v548 = vadd.f32 %v412, %v547
      %v549 = vpop.f32.mrb[0].mxu0
      %v550 = vadd.f32 %v416, %v549
      %v551 = vpop.f32.mrb[0].mxu0
      %v552 = vadd.f32 %v412, %v551
      %v553 = vpop.f32.mrb[0].mxu0
      %v554 = vadd.f32 %v416, %v553
      %555 = vdwg.mxu0
      %556 = vmatprep.subr.bf16.mxu0 %v499
      %557 = vmatpush1.bf16.msra.mxu0 %v496
      %558 = vmatprep.subr.bf16.mxu0 0
      %559 = vmatpush1.bf16.msra.mxu0 0
      %560 = vmatprep.subr.bf16.mxu0 0
      %561 = vmatpush1.bf16.msra.mxu0 0
      %562 = vmatprep.subr.bf16.mxu0 0
      %563 = vmatpush1.bf16.msra.mxu0 0
      %564 = vmatprep.subr.bf16.mxu0 0
      %565 = vmatpush1.bf16.msra.mxu0 0
      %566 = vmatprep.subr.bf16.mxu0 0
      %567 = vmatpush1.bf16.msra.mxu0 0
      %568 = vmatprep.subr.bf16.mxu0 0
      %569 = vmatpush1.bf16.msra.mxu0 0
      %570 = vmatprep.subr.bf16.mxu0 0
      %571 = vmatpush1.bf16.msra.mxu0 0
      %572 = vmatprep.subr.bf16.mxu0 0
      %573 = vmatpush1.bf16.msra.mxu0 0
      %574 = vmatprep.subr.bf16.mxu0 0
      %575 = vmatpush1.bf16.msra.mxu0 0
      %576 = vmatprep.subr.bf16.mxu0 0
      %577 = vmatpush1.bf16.msra.mxu0 0
      %578 = vmatprep.subr.bf16.mxu0 0
      %579 = vmatpush1.bf16.msra.mxu0 0
      %580 = vmatprep.subr.bf16.mxu0 0
      %581 = vmatpush1.bf16.msra.mxu0 0
      %582 = vmatprep.subr.bf16.mxu0 0
      %583 = vmatpush1.bf16.msra.mxu0 0
      %584 = vmatprep.subr.bf16.mxu0 0
      %585 = vmatpush1.bf16.msra.mxu0 0
      %586 = vmatprep.subr.bf16.mxu0 0
      %587 = vmatpush1.bf16.msra.mxu0 0
      %588 = vmatprep.mubr.bf16.mxu0 0
      %589 = vmatmul.mubr.bf16.gmra.mrb[0].mxu0 %v486
      %v590 = vpop.f32.mrb[0].mxu0
      %v591 = vadd.f32 %v420, %v590
      %v592 = vpop.f32.mrb[0].mxu0
      %v593 = vadd.f32 %v424, %v592
      %v594 = vpop.f32.mrb[0].mxu0
      %v595 = vadd.f32 %v420, %v594
      %v596 = vpop.f32.mrb[0].mxu0
      %v597 = vadd.f32 %v424, %v596
      %598 = vdwg.mxu0
      %599 = vmatprep.subr.bf16.mxu0 %v505
      %600 = vmatpush1.bf16.msra.mxu0 %v502
      %601 = vmatprep.subr.bf16.mxu0 0
      %602 = vmatpush1.bf16.msra.mxu0 0
      %603 = vmatprep.subr.bf16.mxu0 0
      %604 = vmatpush1.bf16.msra.mxu0 0
      %605 = vmatprep.subr.bf16.mxu0 0
      %606 = vmatpush1.bf16.msra.mxu0 0
      %607 = vmatprep.subr.bf16.mxu0 0
      %608 = vmatpush1.bf16.msra.mxu0 0
      %609 = vmatprep.subr.bf16.mxu0 0
      %610 = vmatpush1.bf16.msra.mxu0 0
      %611 = vmatprep.subr.bf16.mxu0 0
      %612 = vmatpush1.bf16.msra.mxu0 0
      %613 = vmatprep.subr.bf16.mxu0 0
      %614 = vmatpush1.bf16.msra.mxu0 0
      %615 = vmatprep.subr.bf16.mxu0 0
      %616 = vmatpush1.bf16.msra.mxu0 0
      %617 = vmatprep.subr.bf16.mxu0 0
      %618 = vmatpush1.bf16.msra.mxu0 0
      %619 = vmatprep.subr.bf16.mxu0 0
      %620 = vmatpush1.bf16.msra.mxu0 0
      %621 = vmatprep.subr.bf16.mxu0 0
      %622 = vmatpush1.bf16.msra.mxu0 0
      %623 = vmatprep.subr.bf16.mxu0 0
      %624 = vmatpush1.bf16.msra.mxu0 0
      %625 = vmatprep.subr.bf16.mxu0 0
      %626 = vmatpush1.bf16.msra.mxu0 0
      %627 = vmatprep.subr.bf16.mxu0 0
      %628 = vmatpush1.bf16.msra.mxu0 0
      %629 = vmatprep.subr.bf16.mxu0 0
      %630 = vmatpush1.bf16.msra.mxu0 0
      %631 = vmatprep.mubr.bf16.mxu0 0
      %632 = vmatmul.mubr.bf16.gmra.mrb[0].mxu0 %v486
      %v633 = vpop.f32.mrb[0].mxu0
      %v634 = vadd.f32 %v428, %v633
      %v635 = vpop.f32.mrb[0].mxu0
      %v636 = vadd.f32 %v432, %v635
      %v637 = vpop.f32.mrb[0].mxu0
      %v638 = vadd.f32 %v428, %v637
      %v639 = vpop.f32.mrb[0].mxu0
      %v640 = vadd.f32 %v432, %v639
      %641 = vdwg.mxu0
      %642 = vmatprep.subr.bf16.mxu0 %v511
      %643 = vmatpush1.bf16.msra.mxu0 %v508
      %644 = vmatprep.subr.bf16.mxu0 0
      %645 = vmatpush1.bf16.msra.mxu0 0
      %646 = vmatprep.subr.bf16.mxu0 0
      %647 = vmatpush1.bf16.msra.mxu0 0
      %648 = vmatprep.subr.bf16.mxu0 0
      %649 = vmatpush1.bf16.msra.mxu0 0
      %650 = vmatprep.subr.bf16.mxu0 0
      %651 = vmatpush1.bf16.msra.mxu0 0
      %652 = vmatprep.subr.bf16.mxu0 0
      %653 = vmatpush1.bf16.msra.mxu0 0
      %654 = vmatprep.subr.bf16.mxu0 0
      %655 = vmatpush1.bf16.msra.mxu0 0
      %656 = vmatprep.subr.bf16.mxu0 0
      %657 = vmatpush1.bf16.msra.mxu0 0
      %658 = vmatprep.subr.bf16.mxu0 0
      %659 = vmatpush1.bf16.msra.mxu0 0
      %660 = vmatprep.subr.bf16.mxu0 0
      %661 = vmatpush1.bf16.msra.mxu0 0
      %662 = vmatprep.subr.bf16.mxu0 0
      %663 = vmatpush1.bf16.msra.mxu0 0
      %664 = vmatprep.subr.bf16.mxu0 0
      %665 = vmatpush1.bf16.msra.mxu0 0
      %666 = vmatprep.subr.bf16.mxu0 0
      %667 = vmatpush1.bf16.msra.mxu0 0
      %668 = vmatprep.subr.bf16.mxu0 0
      %669 = vmatpush1.bf16.msra.mxu0 0
      %670 = vmatprep.subr.bf16.mxu0 0
      %671 = vmatpush1.bf16.msra.mxu0 0
      %672 = vmatprep.subr.bf16.mxu0 0
      %673 = vmatpush1.bf16.msra.mxu0 0
      %674 = vmatprep.mubr.bf16.mxu0 0
      %675 = vmatmul.mubr.bf16.gmra.mrb[0].mxu0 %v486
      %v676 = vpop.f32.mrb[0].mxu0
      %v677 = vadd.f32 %v436, %v676
      %v678 = vpop.f32.mrb[0].mxu0
      %v679 = vadd.f32 %v440, %v678
      %v680 = vpop.f32.mrb[0].mxu0
      %v681 = vadd.f32 %v436, %v680
      %v682 = vpop.f32.mrb[0].mxu0
      %v683 = vadd.f32 %v440, %v682
      %684 = vdwg.mxu0
      %v685 = vld [vmem:[#allocation6] sm:$0xf]
      %v686 = vld [vmem:[#allocation6 + $0x4] sm:$0xf]
      %v687 = vld [vmem:[#allocation6 + $0x8] sm:$0xf]
      %v688 = vld [vmem:[#allocation6 + $0xc] sm:$0xf]
      %v689 = vld [vmem:[#allocation6 + $0x10] sm:$0xf]
      %v690 = vld [vmem:[#allocation6 + $0x14] sm:$0xf]
      %v691 = vld [vmem:[#allocation6 + $0x18] sm:$0xf]
      %v692 = vld [vmem:[#allocation6 + $0x1c] sm:$0xf]
      %v693 = vld [vmem:[#allocation6 + $0x20] sm:$0xf]
      %v694 = vld [vmem:[#allocation6 + $0x24] sm:$0xf]
      %v695 = vld [vmem:[#allocation6 + $0x28] sm:$0xf]
      %v696 = vld [vmem:[#allocation6 + $0x2c] sm:$0xf]
      %v697 = vld [vmem:[#allocation6 + $0x30] sm:$0xf]
      %v698 = vld [vmem:[#allocation6 + $0x34] sm:$0xf]
      %v699 = vld [vmem:[#allocation6 + $0x38] sm:$0xf]
      %v700 = vld [vmem:[#allocation6 + $0x3c] sm:$0xf]
      %v701 = vunpack.c.l.bf16 %v685
      %v702 = vunpack.c.l.bf16 %v686
      %v703 = vunpack.c.l.bf16 %v687
      %v704 = vunpack.c.l.bf16 %v688
      %v705 = vunpack.c.l.bf16 %v689
      %v706 = vunpack.c.l.bf16 %v690
      %v707 = vunpack.c.l.bf16 %v691
      %v708 = vunpack.c.l.bf16 %v692
      %v709 = vunpack.c.l.bf16 %v693
      %v710 = vunpack.c.l.bf16 %v694
      %v711 = vunpack.c.l.bf16 %v695
      %v712 = vunpack.c.l.bf16 %v696
      %v713 = vunpack.c.l.bf16 %v697
      %v714 = vunpack.c.l.bf16 %v698
      %v715 = vunpack.c.l.bf16 %v699
      %v716 = vunpack.c.l.bf16 %v700
      %vm717 = vcmask 261120
      %v718 = vsel %vm717, %v701, 0.0
      %v719 = vrot.slane %v718, 4
      %v720 = vadd.f32 %v718, %v719
      %v721 = vrot.slane %v720, 2
      %v722 = vadd.f32 %v720, %v721
      %v723 = vrot.slane %v722, 1
      %v724 = vadd.f32 %v722, %v723
      %v725 = vsel %vm717, %v702, 0.0
      %v726 = vrot.slane %v725, 4
      %v727 = vadd.f32 %v725, %v726
      %v728 = vrot.slane %v727, 2
      %v729 = vadd.f32 %v727, %v728
      %v730 = vrot.slane %v729, 1
      %v731 = vadd.f32 %v729, %v730
      %v732 = vsel %vm717, %v703, 0.0
      %v733 = vrot.slane %v732, 4
      %v734 = vadd.f32 %v732, %v733
      %v735 = vrot.slane %v734, 2
      %v736 = vadd.f32 %v734, %v735
      %v737 = vrot.slane %v736, 1
      %v738 = vadd.f32 %v736, %v737
      %v739 = vsel %vm717, %v704, 0.0
      %v740 = vrot.slane %v739, 4
      %v741 = vadd.f32 %v739, %v740
      %v742 = vrot.slane %v741, 2
      %v743 = vadd.f32 %v741, %v742
      %v744 = vrot.slane %v743, 1
      %v745 = vadd.f32 %v743, %v744
      %v746 = vsel %vm717, %v705, 0.0
      %v747 = vrot.slane %v746, 4
      %v748 = vadd.f32 %v746, %v747
      %v749 = vrot.slane %v748, 2
      %v750 = vadd.f32 %v748, %v749
      %v751 = vrot.slane %v750, 1
      %v752 = vadd.f32 %v750, %v751
      %v753 = vsel %vm717, %v706, 0.0
      %v754 = vrot.slane %v753, 4
      %v755 = vadd.f32 %v753, %v754
      %v756 = vrot.slane %v755, 2
      %v757 = vadd.f32 %v755, %v756
      %v758 = vrot.slane %v757, 1
      %v759 = vadd.f32 %v757, %v758
      %v760 = vsel %vm717, %v707, 0.0
      %v761 = vrot.slane %v760, 4
      %v762 = vadd.f32 %v760, %v761
      %v763 = vrot.slane %v762, 2
      %v764 = vadd.f32 %v762, %v763
      %v765 = vrot.slane %v764, 1
      %v766 = vadd.f32 %v764, %v765
      %v767 = vsel %vm717, %v708, 0.0
      %v768 = vrot.slane %v767, 4
      %v769 = vadd.f32 %v767, %v768
      %v770 = vrot.slane %v769, 2
      %v771 = vadd.f32 %v769, %v770
      %v772 = vrot.slane %v771, 1
      %v773 = vadd.f32 %v771, %v772
      %v774 = vsel %vm717, %v709, 0.0
      %v775 = vrot.slane %v774, 4
      %v776 = vadd.f32 %v774, %v775
      %v777 = vrot.slane %v776, 2
      %v778 = vadd.f32 %v776, %v777
      %v779 = vrot.slane %v778, 1
      %v780 = vadd.f32 %v778, %v779
      %v781 = vsel %vm717, %v710, 0.0
      %v782 = vrot.slane %v781, 4
      %v783 = vadd.f32 %v781, %v782
      %v784 = vrot.slane %v783, 2
      %v785 = vadd.f32 %v783, %v784
      %v786 = vrot.slane %v785, 1
      %v787 = vadd.f32 %v785, %v786
      %v788 = vsel %vm717, %v711, 0.0
      %v789 = vrot.slane %v788, 4
      %v790 = vadd.f32 %v788, %v789
      %v791 = vrot.slane %v790, 2
      %v792 = vadd.f32 %v790, %v791
      %v793 = vrot.slane %v792, 1
      %v794 = vadd.f32 %v792, %v793
      %v795 = vsel %vm717, %v712, 0.0
      %v796 = vrot.slane %v795, 4
      %v797 = vadd.f32 %v795, %v796
      %v798 = vrot.slane %v797, 2
      %v799 = vadd.f32 %v797, %v798
      %v800 = vrot.slane %v799, 1
      %v801 = vadd.f32 %v799, %v800
      %v802 = vsel %vm717, %v713, 0.0
      %v803 = vrot.slane %v802, 4
      %v804 = vadd.f32 %v802, %v803
      %v805 = vrot.slane %v804, 2
      %v806 = vadd.f32 %v804, %v805
      %v807 = vrot.slane %v806, 1
      %v808 = vadd.f32 %v806, %v807
      %v809 = vsel %vm717, %v714, 0.0
      %v810 = vrot.slane %v809, 4
      %v811 = vadd.f32 %v809, %v810
      %v812 = vrot.slane %v811, 2
      %v813 = vadd.f32 %v811, %v812
      %v814 = vrot.slane %v813, 1
      %v815 = vadd.f32 %v813, %v814
      %v816 = vsel %vm717, %v715, 0.0
      %v817 = vrot.slane %v816, 4
      %v818 = vadd.f32 %v816, %v817
      %v819 = vrot.slane %v818, 2
      %v820 = vadd.f32 %v818, %v819
      %v821 = vrot.slane %v820, 1
      %v822 = vadd.f32 %v820, %v821
      %v823 = vsel %vm717, %v716, 0.0
      %v824 = vrot.slane %v823, 4
      %v825 = vadd.f32 %v823, %v824
      %v826 = vrot.slane %v825, 2
      %v827 = vadd.f32 %v825, %v826
      %v828 = vrot.slane %v827, 1
      %v829 = vadd.f32 %v827, %v828
      %v830 = vmul.f32 %v724, 0.125
      %v831 = vmul.f32 %v731, 0.125
      %v832 = vmul.f32 %v738, 0.125
      %v833 = vmul.f32 %v745, 0.125
      %v834 = vmul.f32 %v752, 0.125
      %v835 = vmul.f32 %v759, 0.125
      %v836 = vmul.f32 %v766, 0.125
      %v837 = vmul.f32 %v773, 0.125
      %v838 = vmul.f32 %v780, 0.125
      %v839 = vmul.f32 %v787, 0.125
      %v840 = vmul.f32 %v794, 0.125
      %v841 = vmul.f32 %v801, 0.125
      %v842 = vmul.f32 %v808, 0.125
      %v843 = vmul.f32 %v815, 0.125
      %v844 = vmul.f32 %v822, 0.125
      %v845 = vmul.f32 %v829, 0.125
      %v846 = vpack.c.bf16 %v830, %v830
      %v847 = vpack.c.bf16 %v831, %v831
      %v848 = vpack.c.bf16 %v832, %v832
      %v849 = vpack.c.bf16 %v833, %v833
      %v850 = vpack.c.bf16 %v834, %v834
      %v851 = vpack.c.bf16 %v835, %v835
      %v852 = vpack.c.bf16 %v836, %v836
      %v853 = vpack.c.bf16 %v837, %v837
      %v854 = vpack.c.bf16 %v838, %v838
      %v855 = vpack.c.bf16 %v839, %v839
      %v856 = vpack.c.bf16 %v840, %v840
      %v857 = vpack.c.bf16 %v841, %v841
      %v858 = vpack.c.bf16 %v842, %v842
      %v859 = vpack.c.bf16 %v843, %v843
      %v860 = vpack.c.bf16 %v844, %v844
      %v861 = vpack.c.bf16 %v845, %v845
      %v862 = vld [vmem:[#allocation9] sm:$0xff]
      %v863 = vld [vmem:[#allocation9 + $0x8] sm:$0xff]
      %v864 = vld [vmem:[#allocation9 + $0x10] sm:$0xff]
      %v865 = vld [vmem:[#allocation9 + $0x18] sm:$0xff]
      %v866 = vld [vmem:[#allocation9 + $0x20] sm:$0xff]
      %v867 = vld [vmem:[#allocation9 + $0x28] sm:$0xff]
      %v868 = vld [vmem:[#allocation9 + $0x30] sm:$0xff]
      %v869 = vld [vmem:[#allocation9 + $0x38] sm:$0xff]
      %v870 = vld [vmem:[#allocation9 + $0x40] sm:$0xff]
      %v871 = vld [vmem:[#allocation9 + $0x48] sm:$0xff]
      %v872 = vld [vmem:[#allocation9 + $0x50] sm:$0xff]
      %v873 = vld [vmem:[#allocation9 + $0x58] sm:$0xff]
      %v874 = vld [vmem:[%s5] sm:$0x3f]
      %v876 = vlaneseq
      %v877 = vshrl.u32 %v876, 7
      %v878 = vsub.s32 0, %v877
      %v879 = vrot.slane %v874, %v878
      %v880 = vlaneseq
      %v881 = vshrl.u32 %v880, 7
      %v882 = vsub.s32 1, %v881
      %v883 = vrot.slane %v874, %v882
      %v884 = vlaneseq
      %v885 = vshrl.u32 %v884, 7
      %v886 = vsub.s32 2, %v885
      %v887 = vrot.slane %v874, %v886
      %v888 = vlaneseq
      %v889 = vshrl.u32 %v888, 7
      %v890 = vsub.s32 3, %v889
      %v891 = vrot.slane %v874, %v890
      %v892 = vlaneseq
      %v893 = vshrl.u32 %v892, 7
      %v894 = vsub.s32 4, %v893
      %v895 = vrot.slane %v874, %v894
      %v896 = vlaneseq
      %v897 = vshrl.u32 %v896, 7
      %v898 = vsub.s32 5, %v897
      %v899 = vrot.slane %v874, %v898
      %v922 = vunpack.c.l.b16 %v846
      %v923 = vunpack.c.l.b16 %v847
      %v924 = vunpack.c.l.b16 %v848
      %v925 = vunpack.c.l.b16 %v849
      %v926 = vunpack.c.l.b16 %v850
      %v927 = vunpack.c.l.b16 %v851
      %v928 = vunpack.c.l.b16 %v852
      %v929 = vunpack.c.l.b16 %v853
      %v930 = vunpack.c.l.b16 %v854
      %v931 = vunpack.c.l.b16 %v855
      %v932 = vunpack.c.l.b16 %v856
      %v933 = vunpack.c.l.b16 %v857
      %v934 = vunpack.c.l.b16 %v858
      %v935 = vunpack.c.l.b16 %v859
      %v936 = vunpack.c.l.b16 %v860
      %v937 = vunpack.c.l.b16 %v861
      %v938 = vsel %vm369, %v923, %v922
      %v939 = vsel %vm371, %v924, %v938
      %v940 = vsel %vm373, %v925, %v939
      %v941 = vsel %vm375, %v926, %v940
      %v942 = vsel %vm377, %v927, %v941
      %v943 = vsel %vm379, %v928, %v942
      %v944 = vsel %vm381, %v929, %v943
      %v945 = vsel %vm369, %v931, %v930
      %v946 = vsel %vm371, %v932, %v945
      %v947 = vsel %vm373, %v933, %v946
      %v948 = vsel %vm375, %v934, %v947
      %v949 = vsel %vm377, %v935, %v948
      %v950 = vsel %vm379, %v936, %v949
      %v951 = vsel %vm381, %v937, %v950
      %v952 = vpack.c.b16 %v951, %v944
      %v965 = vunpack.c.l.b16 %v862
      %v966 = vunpack.c.h.b16 %v862
      %v967 = vunpack.c.l.b16 %v863
      %v968 = vunpack.c.h.b16 %v863
      %v969 = vunpack.c.l.b16 %v864
      %v970 = vunpack.c.h.b16 %v864
      %v971 = vunpack.c.l.b16 %v865
      %v972 = vunpack.c.h.b16 %v865
      %v973 = vunpack.c.l.b16 %v866
      %v974 = vunpack.c.h.b16 %v866
      %v975 = vunpack.c.l.b16 %v867
      %v976 = vunpack.c.h.b16 %v867
      %v977 = vunpack.c.l.b16 %v868
      %v978 = vunpack.c.h.b16 %v868
      %v979 = vunpack.c.l.b16 %v869
      %v980 = vunpack.c.h.b16 %v869
      %v981 = vunpack.c.l.b16 %v870
      %v982 = vunpack.c.h.b16 %v870
      %v983 = vunpack.c.l.b16 %v871
      %v984 = vunpack.c.h.b16 %v871
      %v985 = vunpack.c.l.b16 %v872
      %v986 = vunpack.c.h.b16 %v872
      %v987 = vunpack.c.l.b16 %v873
      %v988 = vunpack.c.h.b16 %v873
      %v989 = vpack.c.b16 %v971, %v965
      %v990 = vpack.c.b16 %v972, %v966
      %v991 = vpack.c.b16 %v973, %v967
      %v992 = vpack.c.b16 %v974, %v968
      %v993 = vpack.c.b16 %v975, %v969
      %v994 = vpack.c.b16 %v976, %v970
      %v995 = vpack.c.b16 %v983, %v977
      %v996 = vpack.c.b16 %v984, %v978
      %v997 = vpack.c.b16 %v985, %v979
      %v998 = vpack.c.b16 %v986, %v980
      %v999 = vpack.c.b16 %v987, %v981
      %v1000 = vpack.c.b16 %v988, %v982
      %v1014 = vsel %vm717, %v952, 0
      %1016 = vmatprep.subr.bf16.mxu0 %v990
      %1017 = vmatpush1.bf16.msra.mxu0 %v989
      %1018 = vmatprep.subr.bf16.mxu0 %v996
      %1019 = vmatpush1.bf16.msra.mxu0 %v995
      %1020 = vmatprep.subr.bf16.mxu0 0
      %1021 = vmatpush1.bf16.msra.mxu0 0
      %1022 = vmatprep.subr.bf16.mxu0 0
      %1023 = vmatpush1.bf16.msra.mxu0 0
      %1024 = vmatprep.subr.bf16.mxu0 0
      %1025 = vmatpush1.bf16.msra.mxu0 0
      %1026 = vmatprep.subr.bf16.mxu0 0
      %1027 = vmatpush1.bf16.msra.mxu0 0
      %1028 = vmatprep.subr.bf16.mxu0 0
      %1029 = vmatpush1.bf16.msra.mxu0 0
      %1030 = vmatprep.subr.bf16.mxu0 0
      %1031 = vmatpush1.bf16.msra.mxu0 0
      %1032 = vmatprep.subr.bf16.mxu0 0
      %1033 = vmatpush1.bf16.msra.mxu0 0
      %1034 = vmatprep.subr.bf16.mxu0 0
      %1035 = vmatpush1.bf16.msra.mxu0 0
      %1036 = vmatprep.subr.bf16.mxu0 0
      %1037 = vmatpush1.bf16.msra.mxu0 0
      %1038 = vmatprep.subr.bf16.mxu0 0
      %1039 = vmatpush1.bf16.msra.mxu0 0
      %1040 = vmatprep.subr.bf16.mxu0 0
      %1041 = vmatpush1.bf16.msra.mxu0 0
      %1042 = vmatprep.subr.bf16.mxu0 0
      %1043 = vmatpush1.bf16.msra.mxu0 0
      %1044 = vmatprep.subr.bf16.mxu0 0
      %1045 = vmatpush1.bf16.msra.mxu0 0
      %1046 = vmatprep.subr.bf16.mxu0 0
      %1047 = vmatpush1.bf16.msra.mxu0 0
      %1048 = vmatprep.mubr.bf16.mxu0 0
      %1049 = vmatmul.mubr.bf16.gmra.mrb[0].mxu0 %v1014
      %v1050 = vpop.f32.mrb[0].mxu0
      %v1051 = vadd.f32 %v879, %v1050
      %v1052 = vpop.f32.mrb[0].mxu0
      %v1053 = vadd.f32 %v883, %v1052
      %v1054 = vpop.f32.mrb[0].mxu0
      %v1055 = vadd.f32 %v879, %v1054
      %v1056 = vpop.f32.mrb[0].mxu0
      %v1057 = vadd.f32 %v883, %v1056
      %1058 = vdwg.mxu0
      %1059 = vmatprep.subr.bf16.mxu0 %v992
      %1060 = vmatpush1.bf16.msra.mxu0 %v991
      %1061 = vmatprep.subr.bf16.mxu0 %v998
      %1062 = vmatpush1.bf16.msra.mxu0 %v997
      %1063 = vmatprep.subr.bf16.mxu0 0
      %1064 = vmatpush1.bf16.msra.mxu0 0
      %1065 = vmatprep.subr.bf16.mxu0 0
      %1066 = vmatpush1.bf16.msra.mxu0 0
      %1067 = vmatprep.subr.bf16.mxu0 0
      %1068 = vmatpush1.bf16.msra.mxu0 0
      %1069 = vmatprep.subr.bf16.mxu0 0
      %1070 = vmatpush1.bf16.msra.mxu0 0
      %1071 = vmatprep.subr.bf16.mxu0 0
      %1072 = vmatpush1.bf16.msra.mxu0 0
      %1073 = vmatprep.subr.bf16.mxu0 0
      %1074 = vmatpush1.bf16.msra.mxu0 0
      %1075 = vmatprep.subr.bf16.mxu0 0
      %1076 = vmatpush1.bf16.msra.mxu0 0
      %1077 = vmatprep.subr.bf16.mxu0 0
      %1078 = vmatpush1.bf16.msra.mxu0 0
      %1079 = vmatprep.subr.bf16.mxu0 0
      %1080 = vmatpush1.bf16.msra.mxu0 0
      %1081 = vmatprep.subr.bf16.mxu0 0
      %1082 = vmatpush1.bf16.msra.mxu0 0
      %1083 = vmatprep.subr.bf16.mxu0 0
      %1084 = vmatpush1.bf16.msra.mxu0 0
      %1085 = vmatprep.subr.bf16.mxu0 0
      %1086 = vmatpush1.bf16.msra.mxu0 0
      %1087 = vmatprep.subr.bf16.mxu0 0
      %1088 = vmatpush1.bf16.msra.mxu0 0
      %1089 = vmatprep.subr.bf16.mxu0 0
      %1090 = vmatpush1.bf16.msra.mxu0 0
      %1091 = vmatprep.mubr.bf16.mxu0 0
      %1092 = vmatmul.mubr.bf16.gmra.mrb[0].mxu0 %v1014
      %v1093 = vpop.f32.mrb[0].mxu0
      %v1094 = vadd.f32 %v887, %v1093
      %v1095 = vpop.f32.mrb[0].mxu0
      %v1096 = vadd.f32 %v891, %v1095
      %v1097 = vpop.f32.mrb[0].mxu0
      %v1098 = vadd.f32 %v887, %v1097
      %v1099 = vpop.f32.mrb[0].mxu0
      %v1100 = vadd.f32 %v891, %v1099
      %1101 = vdwg.mxu0
      %1102 = vmatprep.subr.bf16.mxu0 %v994
      %1103 = vmatpush1.bf16.msra.mxu0 %v993
      %1104 = vmatprep.subr.bf16.mxu0 %v1000
      %1105 = vmatpush1.bf16.msra.mxu0 %v999
      %1106 = vmatprep.subr.bf16.mxu0 0
      %1107 = vmatpush1.bf16.msra.mxu0 0
      %1108 = vmatprep.subr.bf16.mxu0 0
      %1109 = vmatpush1.bf16.msra.mxu0 0
      %1110 = vmatprep.subr.bf16.mxu0 0
      %1111 = vmatpush1.bf16.msra.mxu0 0
      %1112 = vmatprep.subr.bf16.mxu0 0
      %1113 = vmatpush1.bf16.msra.mxu0 0
      %1114 = vmatprep.subr.bf16.mxu0 0
      %1115 = vmatpush1.bf16.msra.mxu0 0
      %1116 = vmatprep.subr.bf16.mxu0 0
      %1117 = vmatpush1.bf16.msra.mxu0 0
      %1118 = vmatprep.subr.bf16.mxu0 0
      %1119 = vmatpush1.bf16.msra.mxu0 0
      %1120 = vmatprep.subr.bf16.mxu0 0
      %1121 = vmatpush1.bf16.msra.mxu0 0
      %1122 = vmatprep.subr.bf16.mxu0 0
      %1123 = vmatpush1.bf16.msra.mxu0 0
      %1124 = vmatprep.subr.bf16.mxu0 0
      %1125 = vmatpush1.bf16.msra.mxu0 0
      %1126 = vmatprep.subr.bf16.mxu0 0
      %1127 = vmatpush1.bf16.msra.mxu0 0
      %1128 = vmatprep.subr.bf16.mxu0 0
      %1129 = vmatpush1.bf16.msra.mxu0 0
      %1130 = vmatprep.subr.bf16.mxu0 0
      %1131 = vmatpush1.bf16.msra.mxu0 0
      %1132 = vmatprep.subr.bf16.mxu0 0
      %1133 = vmatpush1.bf16.msra.mxu0 0
      %1134 = vmatprep.mubr.bf16.mxu0 0
      %1135 = vmatmul.mubr.bf16.gmra.mrb[0].mxu0 %v1014
      %v1136 = vpop.f32.mrb[0].mxu0
      %v1137 = vadd.f32 %v895, %v1136
      %v1138 = vpop.f32.mrb[0].mxu0
      %v1139 = vadd.f32 %v899, %v1138
      %v1140 = vpop.f32.mrb[0].mxu0
      %v1141 = vadd.f32 %v895, %v1140
      %v1142 = vpop.f32.mrb[0].mxu0
      %v1143 = vadd.f32 %v899, %v1142
      %1144 = vdwg.mxu0
      %1145 = vst [vmem:[#allocation15] sm:$0xff] %v548
      %1146 = vst [vmem:[#allocation15 + $0x8] sm:$0xff] %v550
      %1147 = vst [vmem:[#allocation15 + $0x10] sm:$0xff] %v591
      %1148 = vst [vmem:[#allocation15 + $0x18] sm:$0xff] %v593
      %1149 = vst [vmem:[#allocation15 + $0x20] sm:$0xff] %v634
      %1150 = vst [vmem:[#allocation15 + $0x28] sm:$0xff] %v636
      %1151 = vst [vmem:[#allocation15 + $0x30] sm:$0xff] %v677
      %1152 = vst [vmem:[#allocation15 + $0x38] sm:$0xff] %v679
      %1153 = vst [vmem:[#allocation15 + $0x70] sm:$0xff] %v552
      %1154 = vst [vmem:[#allocation15 + $0x78] sm:$0xff] %v554
      %1155 = vst [vmem:[#allocation15 + $0x80] sm:$0xff] %v595
      %1156 = vst [vmem:[#allocation15 + $0x88] sm:$0xff] %v597
      %1157 = vst [vmem:[#allocation15 + $0x90] sm:$0xff] %v638
      %1158 = vst [vmem:[#allocation15 + $0x98] sm:$0xff] %v640
      %1159 = vst [vmem:[#allocation15 + $0xa0] sm:$0xff] %v681
      %1160 = vst [vmem:[#allocation15 + $0xa8] sm:$0xff] %v683
      %1161 = vst [vmem:[#allocation15 + $0x40] sm:$0xff] %v1051
      %1162 = vst [vmem:[#allocation15 + $0x48] sm:$0xff] %v1053
      %1163 = vst [vmem:[#allocation15 + $0x50] sm:$0xff] %v1094
      %1164 = vst [vmem:[#allocation15 + $0x58] sm:$0xff] %v1096
      %1165 = vst [vmem:[#allocation15 + $0x60] sm:$0xff] %v1137
      %1166 = vst [vmem:[#allocation15 + $0x68] sm:$0xff] %v1139
      %1167 = vst [vmem:[#allocation15 + $0xb0] sm:$0xff] %v1055
      %1168 = vst [vmem:[#allocation15 + $0xb8] sm:$0xff] %v1057
      %1169 = vst [vmem:[#allocation15 + $0xc0] sm:$0xff] %v1098
      %1170 = vst [vmem:[#allocation15 + $0xc8] sm:$0xff] %v1100
      %1171 = vst [vmem:[#allocation15 + $0xd0] sm:$0xff] %v1141
      %1172 = vst [vmem:[#allocation15 + $0xd8] sm:$0xff] %v1143
      %v1173 = vpack.c.bf16 %v552, %v548
      %v1174 = vpack.c.bf16 %v554, %v550
      %v1175 = vpack.c.bf16 %v595, %v591
      %v1176 = vpack.c.bf16 %v597, %v593
      %v1177 = vpack.c.bf16 %v638, %v634
      %v1178 = vpack.c.bf16 %v640, %v636
      %v1179 = vpack.c.bf16 %v681, %v677
      %v1180 = vpack.c.bf16 %v683, %v679
      %v1181 = vld [vmem:[#allocation11] sm:$0xf]
      %v1182 = vld [vmem:[#allocation11 + $0x4] sm:$0xf]
      %v1183 = vld [vmem:[#allocation11 + $0x8] sm:$0xf]
      %v1184 = vld [vmem:[#allocation11 + $0xc] sm:$0xf]
      %v1185 = vld [vmem:[#allocation11 + $0x10] sm:$0xf]
      %v1186 = vld [vmem:[#allocation11 + $0x14] sm:$0xf]
      %v1187 = vld [vmem:[#allocation11 + $0x18] sm:$0xf]
      %v1188 = vld [vmem:[#allocation11 + $0x1c] sm:$0xf]
      %v1189 = vld [vmem:[#allocation11 + $0x20] sm:$0xf]
      %v1190 = vld [vmem:[#allocation11 + $0x24] sm:$0xf]
      %v1191 = vld [vmem:[#allocation11 + $0x28] sm:$0xf]
      %v1192 = vld [vmem:[#allocation11 + $0x2c] sm:$0xf]
      %v1193 = vld [vmem:[#allocation11 + $0x30] sm:$0xf]
      %v1194 = vld [vmem:[#allocation11 + $0x34] sm:$0xf]
      %v1195 = vld [vmem:[#allocation11 + $0x38] sm:$0xf]
      %v1196 = vld [vmem:[#allocation11 + $0x3c] sm:$0xf]
      %v1197 = vld [vmem:[#allocation11 + $0x40] sm:$0xf]
      %v1198 = vld [vmem:[#allocation11 + $0x44] sm:$0xf]
      %v1199 = vld [vmem:[#allocation11 + $0x48] sm:$0xf]
      %v1200 = vld [vmem:[#allocation11 + $0x4c] sm:$0xf]
      %v1201 = vld [vmem:[#allocation11 + $0x50] sm:$0xf]
      %v1202 = vld [vmem:[#allocation11 + $0x54] sm:$0xf]
      %v1203 = vld [vmem:[#allocation11 + $0x58] sm:$0xf]
      %v1204 = vld [vmem:[#allocation11 + $0x5c] sm:$0xf]
      %v1205 = vld [vmem:[#allocation11 + $0x60] sm:$0xf]
      %v1206 = vld [vmem:[#allocation11 + $0x64] sm:$0xf]
      %v1207 = vld [vmem:[#allocation11 + $0x68] sm:$0xf]
      %v1208 = vld [vmem:[#allocation11 + $0x6c] sm:$0xf]
      %v1209 = vld [vmem:[#allocation11 + $0x70] sm:$0xf]
      %v1210 = vld [vmem:[#allocation11 + $0x74] sm:$0xf]
      %v1211 = vld [vmem:[#allocation11 + $0x78] sm:$0xf]
      %v1212 = vld [vmem:[#allocation11 + $0x7c] sm:$0xf]
      %v1213 = vld [vmem:[#allocation11 + $0x80] sm:$0xf]
      %v1214 = vld [vmem:[#allocation11 + $0x84] sm:$0xf]
      %v1215 = vld [vmem:[#allocation11 + $0x88] sm:$0xf]
      %v1216 = vld [vmem:[#allocation11 + $0x8c] sm:$0xf]
      %v1217 = vld [vmem:[#allocation11 + $0x90] sm:$0xf]
      %v1218 = vld [vmem:[#allocation11 + $0x94] sm:$0xf]
      %v1219 = vld [vmem:[#allocation11 + $0x98] sm:$0xf]
      %v1220 = vld [vmem:[#allocation11 + $0x9c] sm:$0xf]
      %v1221 = vld [vmem:[#allocation11 + $0xa0] sm:$0xf]
      %v1222 = vld [vmem:[#allocation11 + $0xa4] sm:$0xf]
      %v1223 = vld [vmem:[#allocation11 + $0xa8] sm:$0xf]
      %v1224 = vld [vmem:[#allocation11 + $0xac] sm:$0xf]
      %v1225 = vld [vmem:[#allocation11 + $0xb0] sm:$0xf]
      %v1226 = vld [vmem:[#allocation11 + $0xb4] sm:$0xf]
      %v1227 = vld [vmem:[#allocation11 + $0xb8] sm:$0xf]
      %v1228 = vld [vmem:[#allocation11 + $0xbc] sm:$0xf]
      %v1229 = vld [vmem:[#allocation11 + $0xc0] sm:$0xf]
      %v1230 = vld [vmem:[#allocation11 + $0xc4] sm:$0xf]
      %v1231 = vld [vmem:[#allocation11 + $0xc8] sm:$0xf]
      %v1232 = vld [vmem:[#allocation11 + $0xcc] sm:$0xf]
      %v1233 = vld [vmem:[#allocation11 + $0xd0] sm:$0xf]
      %v1234 = vld [vmem:[#allocation11 + $0xd4] sm:$0xf]
      %v1235 = vld [vmem:[#allocation11 + $0xd8] sm:$0xf]
      %v1236 = vld [vmem:[#allocation11 + $0xdc] sm:$0xf]
      %v1237 = vld [vmem:[#allocation11 + $0xe0] sm:$0xf]
      %v1238 = vld [vmem:[#allocation11 + $0xe4] sm:$0xf]
      %v1239 = vld [vmem:[#allocation11 + $0xe8] sm:$0xf]
      %v1240 = vld [vmem:[#allocation11 + $0xec] sm:$0xf]
      %v1241 = vld [vmem:[#allocation11 + $0xf0] sm:$0xf]
      %v1242 = vld [vmem:[#allocation11 + $0xf4] sm:$0xf]
      %v1243 = vld [vmem:[#allocation11 + $0xf8] sm:$0xf]
      %v1244 = vld [vmem:[#allocation11 + $0xfc] sm:$0xf]
      %v1245 = vld [vmem:[#allocation11 + $0x100] sm:$0xf]
      %v1246 = vld [vmem:[#allocation11 + $0x104] sm:$0xf]
      %v1247 = vld [vmem:[#allocation11 + $0x108] sm:$0xf]
      %v1248 = vld [vmem:[#allocation11 + $0x10c] sm:$0xf]
      %v1249 = vld [vmem:[#allocation11 + $0x110] sm:$0xf]
      %v1250 = vld [vmem:[#allocation11 + $0x114] sm:$0xf]
      %v1251 = vld [vmem:[#allocation11 + $0x118] sm:$0xf]
      %v1252 = vld [vmem:[#allocation11 + $0x11c] sm:$0xf]
      %v1253 = vld [vmem:[#allocation11 + $0x120] sm:$0xf]
      %v1254 = vld [vmem:[#allocation11 + $0x124] sm:$0xf]
      %v1255 = vld [vmem:[#allocation11 + $0x128] sm:$0xf]
      %v1256 = vld [vmem:[#allocation11 + $0x12c] sm:$0xf]
      %v1257 = vld [vmem:[#allocation11 + $0x130] sm:$0xf]
      %v1258 = vld [vmem:[#allocation11 + $0x134] sm:$0xf]
      %v1259 = vld [vmem:[#allocation11 + $0x138] sm:$0xf]
      %v1260 = vld [vmem:[#allocation11 + $0x13c] sm:$0xf]
      %v1261 = vld [vmem:[#allocation11 + $0x140] sm:$0xf]
      %v1262 = vld [vmem:[#allocation11 + $0x144] sm:$0xf]
      %v1263 = vld [vmem:[#allocation11 + $0x148] sm:$0xf]
      %v1264 = vld [vmem:[#allocation11 + $0x14c] sm:$0xf]
      %v1265 = vld [vmem:[#allocation11 + $0x150] sm:$0xf]
      %v1266 = vld [vmem:[#allocation11 + $0x154] sm:$0xf]
      %v1267 = vld [vmem:[#allocation11 + $0x158] sm:$0xf]
      %v1268 = vld [vmem:[#allocation11 + $0x15c] sm:$0xf]
      %v1269 = vld [vmem:[#allocation11 + $0x160] sm:$0xf]
      %v1270 = vld [vmem:[#allocation11 + $0x164] sm:$0xf]
      %v1271 = vld [vmem:[#allocation11 + $0x168] sm:$0xf]
      %v1272 = vld [vmem:[#allocation11 + $0x16c] sm:$0xf]
      %v1273 = vld [vmem:[#allocation11 + $0x170] sm:$0xf]
      %v1274 = vld [vmem:[#allocation11 + $0x174] sm:$0xf]
      %v1275 = vld [vmem:[#allocation11 + $0x178] sm:$0xf]
      %v1276 = vld [vmem:[#allocation11 + $0x17c] sm:$0xf]
      %v1277 = vld [vmem:[#allocation11 + $0x180] sm:$0xf]
      %v1278 = vld [vmem:[#allocation11 + $0x184] sm:$0xf]
      %v1279 = vld [vmem:[#allocation11 + $0x188] sm:$0xf]
      %v1280 = vld [vmem:[#allocation11 + $0x18c] sm:$0xf]
      %v1281 = vld [vmem:[#allocation11 + $0x190] sm:$0xf]
      %v1282 = vld [vmem:[#allocation11 + $0x194] sm:$0xf]
      %v1283 = vld [vmem:[#allocation11 + $0x198] sm:$0xf]
      %v1284 = vld [vmem:[#allocation11 + $0x19c] sm:$0xf]
      %v1285 = vld [vmem:[#allocation11 + $0x1a0] sm:$0xf]
      %v1286 = vld [vmem:[#allocation11 + $0x1a4] sm:$0xf]
      %v1287 = vld [vmem:[#allocation11 + $0x1a8] sm:$0xf]
      %v1288 = vld [vmem:[#allocation11 + $0x1ac] sm:$0xf]
      %v1289 = vld [vmem:[#allocation11 + $0x1b0] sm:$0xf]
      %v1290 = vld [vmem:[#allocation11 + $0x1b4] sm:$0xf]
      %v1291 = vld [vmem:[#allocation11 + $0x1b8] sm:$0xf]
      %v1292 = vld [vmem:[#allocation11 + $0x1bc] sm:$0xf]
      %v1293 = vld [vmem:[#allocation11 + $0x1c0] sm:$0xf]
      %v1294 = vld [vmem:[#allocation11 + $0x1c4] sm:$0xf]
      %v1295 = vld [vmem:[#allocation11 + $0x1c8] sm:$0xf]
      %v1296 = vld [vmem:[#allocation11 + $0x1cc] sm:$0xf]
      %v1297 = vld [vmem:[#allocation11 + $0x1d0] sm:$0xf]
      %v1298 = vld [vmem:[#allocation11 + $0x1d4] sm:$0xf]
      %v1299 = vld [vmem:[#allocation11 + $0x1d8] sm:$0xf]
      %v1300 = vld [vmem:[#allocation11 + $0x1dc] sm:$0xf]
      %v1301 = vld [vmem:[#allocation11 + $0x1e0] sm:$0xf]
      %v1302 = vld [vmem:[#allocation11 + $0x1e4] sm:$0xf]
      %v1303 = vld [vmem:[#allocation11 + $0x1e8] sm:$0xf]
      %v1304 = vld [vmem:[#allocation11 + $0x1ec] sm:$0xf]
      %v1305 = vld [vmem:[#allocation11 + $0x1f0] sm:$0xf]
      %v1306 = vld [vmem:[#allocation11 + $0x1f4] sm:$0xf]
      %v1307 = vld [vmem:[#allocation11 + $0x1f8] sm:$0xf]
      %v1308 = vld [vmem:[#allocation11 + $0x1fc] sm:$0xf]
      %v1309 = vpack.c.bf16 %v1055, %v1051
      %v1310 = vpack.c.bf16 %v1057, %v1053
      %v1311 = vpack.c.bf16 %v1098, %v1094
      %v1312 = vpack.c.bf16 %v1100, %v1096
      %v1313 = vpack.c.bf16 %v1141, %v1137
      %v1314 = vpack.c.bf16 %v1143, %v1139
      %v1315 = vld [vmem:[#allocation12] sm:$0xf]
      %v1316 = vld [vmem:[#allocation12 + $0x4] sm:$0xf]
      %v1317 = vld [vmem:[#allocation12 + $0x8] sm:$0xf]
      %v1318 = vld [vmem:[#allocation12 + $0xc] sm:$0xf]
      %v1319 = vld [vmem:[#allocation12 + $0x10] sm:$0xf]
      %v1320 = vld [vmem:[#allocation12 + $0x14] sm:$0xf]
      %v1321 = vld [vmem:[#allocation12 + $0x18] sm:$0xf]
      %v1322 = vld [vmem:[#allocation12 + $0x1c] sm:$0xf]
      %v1323 = vld [vmem:[#allocation12 + $0x20] sm:$0xf]
      %v1324 = vld [vmem:[#allocation12 + $0x24] sm:$0xf]
      %v1325 = vld [vmem:[#allocation12 + $0x28] sm:$0xf]
      %v1326 = vld [vmem:[#allocation12 + $0x2c] sm:$0xf]
      %v1327 = vld [vmem:[#allocation12 + $0x30] sm:$0xf]
      %v1328 = vld [vmem:[#allocation12 + $0x34] sm:$0xf]
      %v1329 = vld [vmem:[#allocation12 + $0x38] sm:$0xf]
      %v1330 = vld [vmem:[#allocation12 + $0x3c] sm:$0xf]
      %v1331 = vld [vmem:[#allocation12 + $0x40] sm:$0xf]
      %v1332 = vld [vmem:[#allocation12 + $0x44] sm:$0xf]
      %v1333 = vld [vmem:[#allocation12 + $0x48] sm:$0xf]
      %v1334 = vld [vmem:[#allocation12 + $0x4c] sm:$0xf]
      %v1335 = vld [vmem:[#allocation12 + $0x50] sm:$0xf]
      %v1336 = vld [vmem:[#allocation12 + $0x54] sm:$0xf]
      %v1337 = vld [vmem:[#allocation12 + $0x58] sm:$0xf]
      %v1338 = vld [vmem:[#allocation12 + $0x5c] sm:$0xf]
      %v1339 = vld [vmem:[#allocation12 + $0x60] sm:$0xf]
      %v1340 = vld [vmem:[#allocation12 + $0x64] sm:$0xf]
      %v1341 = vld [vmem:[#allocation12 + $0x68] sm:$0xf]
      %v1342 = vld [vmem:[#allocation12 + $0x6c] sm:$0xf]
      %v1343 = vld [vmem:[#allocation12 + $0x70] sm:$0xf]
      %v1344 = vld [vmem:[#allocation12 + $0x74] sm:$0xf]
      %v1345 = vld [vmem:[#allocation12 + $0x78] sm:$0xf]
      %v1346 = vld [vmem:[#allocation12 + $0x7c] sm:$0xf]
      %v1347 = vld [vmem:[#allocation12 + $0x80] sm:$0xf]
      %v1348 = vld [vmem:[#allocation12 + $0x84] sm:$0xf]
      %v1349 = vld [vmem:[#allocation12 + $0x88] sm:$0xf]
      %v1350 = vld [vmem:[#allocation12 + $0x8c] sm:$0xf]
      %v1351 = vld [vmem:[#allocation12 + $0x90] sm:$0xf]
      %v1352 = vld [vmem:[#allocation12 + $0x94] sm:$0xf]
      %v1353 = vld [vmem:[#allocation12 + $0x98] sm:$0xf]
      %v1354 = vld [vmem:[#allocation12 + $0x9c] sm:$0xf]
      %v1355 = vld [vmem:[#allocation12 + $0xa0] sm:$0xf]
      %v1356 = vld [vmem:[#allocation12 + $0xa4] sm:$0xf]
      %v1357 = vld [vmem:[#allocation12 + $0xa8] sm:$0xf]
      %v1358 = vld [vmem:[#allocation12 + $0xac] sm:$0xf]
      %v1359 = vld [vmem:[#allocation12 + $0xb0] sm:$0xf]
      %v1360 = vld [vmem:[#allocation12 + $0xb4] sm:$0xf]
      %v1361 = vld [vmem:[#allocation12 + $0xb8] sm:$0xf]
      %v1362 = vld [vmem:[#allocation12 + $0xbc] sm:$0xf]
      %v1363 = vld [vmem:[#allocation12 + $0xc0] sm:$0xf]
      %v1364 = vld [vmem:[#allocation12 + $0xc4] sm:$0xf]
      %v1365 = vld [vmem:[#allocation12 + $0xc8] sm:$0xf]
      %v1366 = vld [vmem:[#allocation12 + $0xcc] sm:$0xf]
      %v1367 = vld [vmem:[#allocation12 + $0xd0] sm:$0xf]
      %v1368 = vld [vmem:[#allocation12 + $0xd4] sm:$0xf]
      %v1369 = vld [vmem:[#allocation12 + $0xd8] sm:$0xf]
      %v1370 = vld [vmem:[#allocation12 + $0xdc] sm:$0xf]
      %v1371 = vld [vmem:[#allocation12 + $0xe0] sm:$0xf]
      %v1372 = vld [vmem:[#allocation12 + $0xe4] sm:$0xf]
      %v1373 = vld [vmem:[#allocation12 + $0xe8] sm:$0xf]
      %v1374 = vld [vmem:[#allocation12 + $0xec] sm:$0xf]
      %v1375 = vld [vmem:[#allocation12 + $0xf0] sm:$0xf]
      %v1376 = vld [vmem:[#allocation12 + $0xf4] sm:$0xf]
      %v1377 = vld [vmem:[#allocation12 + $0xf8] sm:$0xf]
      %v1378 = vld [vmem:[#allocation12 + $0xfc] sm:$0xf]
      %v1379 = vld [vmem:[#allocation12 + $0x100] sm:$0xf]
      %v1380 = vld [vmem:[#allocation12 + $0x104] sm:$0xf]
      %v1381 = vld [vmem:[#allocation12 + $0x108] sm:$0xf]
      %v1382 = vld [vmem:[#allocation12 + $0x10c] sm:$0xf]
      %v1383 = vld [vmem:[#allocation12 + $0x110] sm:$0xf]
      %v1384 = vld [vmem:[#allocation12 + $0x114] sm:$0xf]
      %v1385 = vld [vmem:[#allocation12 + $0x118] sm:$0xf]
      %v1386 = vld [vmem:[#allocation12 + $0x11c] sm:$0xf]
      %v1387 = vld [vmem:[#allocation12 + $0x120] sm:$0xf]
      %v1388 = vld [vmem:[#allocation12 + $0x124] sm:$0xf]
      %v1389 = vld [vmem:[#allocation12 + $0x128] sm:$0xf]
      %v1390 = vld [vmem:[#allocation12 + $0x12c] sm:$0xf]
      %v1391 = vld [vmem:[#allocation12 + $0x130] sm:$0xf]
      %v1392 = vld [vmem:[#allocation12 + $0x134] sm:$0xf]
      %v1393 = vld [vmem:[#allocation12 + $0x138] sm:$0xf]
      %v1394 = vld [vmem:[#allocation12 + $0x13c] sm:$0xf]
      %v1395 = vld [vmem:[#allocation12 + $0x140] sm:$0xf]
      %v1396 = vld [vmem:[#allocation12 + $0x144] sm:$0xf]
      %v1397 = vld [vmem:[#allocation12 + $0x148] sm:$0xf]
      %v1398 = vld [vmem:[#allocation12 + $0x14c] sm:$0xf]
      %v1399 = vld [vmem:[#allocation12 + $0x150] sm:$0xf]
      %v1400 = vld [vmem:[#allocation12 + $0x154] sm:$0xf]
      %v1401 = vld [vmem:[#allocation12 + $0x158] sm:$0xf]
      %v1402 = vld [vmem:[#allocation12 + $0x15c] sm:$0xf]
      %v1403 = vld [vmem:[#allocation12 + $0x160] sm:$0xf]
      %v1404 = vld [vmem:[#allocation12 + $0x164] sm:$0xf]
      %v1405 = vld [vmem:[#allocation12 + $0x168] sm:$0xf]
      %v1406 = vld [vmem:[#allocation12 + $0x16c] sm:$0xf]
      %v1407 = vld [vmem:[#allocation12 + $0x170] sm:$0xf]
      %v1408 = vld [vmem:[#allocation12 + $0x174] sm:$0xf]
      %v1409 = vld [vmem:[#allocation12 + $0x178] sm:$0xf]
      %v1410 = vld [vmem:[#allocation12 + $0x17c] sm:$0xf]
      %v1507 = vunpack.c.l.b16 %v1315
      %v1508 = vunpack.c.l.b16 %v1316
      %v1509 = vunpack.c.l.b16 %v1317
      %v1510 = vunpack.c.l.b16 %v1318
      %v1511 = vunpack.c.l.b16 %v1319
      %v1512 = vunpack.c.l.b16 %v1320
      %v1513 = vunpack.c.l.b16 %v1321
      %v1514 = vunpack.c.l.b16 %v1322
      %v1515 = vunpack.c.l.b16 %v1323
      %v1516 = vunpack.c.l.b16 %v1324
      %v1517 = vunpack.c.l.b16 %v1325
      %v1518 = vunpack.c.l.b16 %v1326
      %v1519 = vunpack.c.l.b16 %v1327
      %v1520 = vunpack.c.l.b16 %v1328
      %v1521 = vunpack.c.l.b16 %v1329
      %v1522 = vunpack.c.l.b16 %v1330
      %v1523 = vunpack.c.l.b16 %v1331
      %v1524 = vunpack.c.l.b16 %v1332
      %v1525 = vunpack.c.l.b16 %v1333
      %v1526 = vunpack.c.l.b16 %v1334
      %v1527 = vunpack.c.l.b16 %v1335
      %v1528 = vunpack.c.l.b16 %v1336
      %v1529 = vunpack.c.l.b16 %v1337
      %v1530 = vunpack.c.l.b16 %v1338
      %v1531 = vunpack.c.l.b16 %v1339
      %v1532 = vunpack.c.l.b16 %v1340
      %v1533 = vunpack.c.l.b16 %v1341
      %v1534 = vunpack.c.l.b16 %v1342
      %v1535 = vunpack.c.l.b16 %v1343
      %v1536 = vunpack.c.l.b16 %v1344
      %v1537 = vunpack.c.l.b16 %v1345
      %v1538 = vunpack.c.l.b16 %v1346
      %v1539 = vunpack.c.l.b16 %v1347
      %v1540 = vunpack.c.l.b16 %v1348
      %v1541 = vunpack.c.l.b16 %v1349
      %v1542 = vunpack.c.l.b16 %v1350
      %v1543 = vunpack.c.l.b16 %v1351
      %v1544 = vunpack.c.l.b16 %v1352
      %v1545 = vunpack.c.l.b16 %v1353
      %v1546 = vunpack.c.l.b16 %v1354
      %v1547 = vunpack.c.l.b16 %v1355
      %v1548 = vunpack.c.l.b16 %v1356
      %v1549 = vunpack.c.l.b16 %v1357
      %v1550 = vunpack.c.l.b16 %v1358
      %v1551 = vunpack.c.l.b16 %v1359
      %v1552 = vunpack.c.l.b16 %v1360
      %v1553 = vunpack.c.l.b16 %v1361
      %v1554 = vunpack.c.l.b16 %v1362
      %v1555 = vunpack.c.l.b16 %v1363
      %v1556 = vunpack.c.l.b16 %v1364
      %v1557 = vunpack.c.l.b16 %v1365
      %v1558 = vunpack.c.l.b16 %v1366
      %v1559 = vunpack.c.l.b16 %v1367
      %v1560 = vunpack.c.l.b16 %v1368
      %v1561 = vunpack.c.l.b16 %v1369
      %v1562 = vunpack.c.l.b16 %v1370
      %v1563 = vunpack.c.l.b16 %v1371
      %v1564 = vunpack.c.l.b16 %v1372
      %v1565 = vunpack.c.l.b16 %v1373
      %v1566 = vunpack.c.l.b16 %v1374
      %v1567 = vunpack.c.l.b16 %v1375
      %v1568 = vunpack.c.l.b16 %v1376
      %v1569 = vunpack.c.l.b16 %v1377
      %v1570 = vunpack.c.l.b16 %v1378
      %v1571 = vunpack.c.l.b16 %v1379
      %v1572 = vunpack.c.l.b16 %v1380
      %v1573 = vunpack.c.l.b16 %v1381
      %v1574 = vunpack.c.l.b16 %v1382
      %v1575 = vunpack.c.l.b16 %v1383
      %v1576 = vunpack.c.l.b16 %v1384
      %v1577 = vunpack.c.l.b16 %v1385
      %v1578 = vunpack.c.l.b16 %v1386
      %v1579 = vunpack.c.l.b16 %v1387
      %v1580 = vunpack.c.l.b16 %v1388
      %v1581 = vunpack.c.l.b16 %v1389
      %v1582 = vunpack.c.l.b16 %v1390
      %v1583 = vunpack.c.l.b16 %v1391
      %v1584 = vunpack.c.l.b16 %v1392
      %v1585 = vunpack.c.l.b16 %v1393
      %v1586 = vunpack.c.l.b16 %v1394
      %v1587 = vunpack.c.l.b16 %v1395
      %v1588 = vunpack.c.l.b16 %v1396
      %v1589 = vunpack.c.l.b16 %v1397
      %v1590 = vunpack.c.l.b16 %v1398
      %v1591 = vunpack.c.l.b16 %v1399
      %v1592 = vunpack.c.l.b16 %v1400
      %v1593 = vunpack.c.l.b16 %v1401
      %v1594 = vunpack.c.l.b16 %v1402
      %v1595 = vunpack.c.l.b16 %v1403
      %v1596 = vunpack.c.l.b16 %v1404
      %v1597 = vunpack.c.l.b16 %v1405
      %v1598 = vunpack.c.l.b16 %v1406
      %v1599 = vunpack.c.l.b16 %v1407
      %v1600 = vunpack.c.l.b16 %v1408
      %v1601 = vunpack.c.l.b16 %v1409
      %v1602 = vunpack.c.l.b16 %v1410
      %v1603 = vpack.c.b16 %v1508, %v1507
      %v1604 = vpack.c.b16 %v1510, %v1509
      %v1605 = vpack.c.b16 %v1512, %v1511
      %v1606 = vpack.c.b16 %v1514, %v1513
      %v1607 = vpack.c.b16 %v1516, %v1515
      %v1608 = vpack.c.b16 %v1518, %v1517
      %v1609 = vpack.c.b16 %v1520, %v1519
      %v1610 = vpack.c.b16 %v1522, %v1521
      %v1611 = vpack.c.b16 %v1524, %v1523
      %v1612 = vpack.c.b16 %v1526, %v1525
      %v1613 = vpack.c.b16 %v1528, %v1527
      %v1614 = vpack.c.b16 %v1530, %v1529
      %v1615 = vpack.c.b16 %v1532, %v1531
      %v1616 = vpack.c.b16 %v1534, %v1533
      %v1617 = vpack.c.b16 %v1536, %v1535
      %v1618 = vpack.c.b16 %v1538, %v1537
      %v1619 = vpack.c.b16 %v1540, %v1539
      %v1620 = vpack.c.b16 %v1542, %v1541
      %v1621 = vpack.c.b16 %v1544, %v1543
      %v1622 = vpack.c.b16 %v1546, %v1545
      %v1623 = vpack.c.b16 %v1548, %v1547
      %v1624 = vpack.c.b16 %v1550, %v1549
      %v1625 = vpack.c.b16 %v1552, %v1551
      %v1626 = vpack.c.b16 %v1554, %v1553
      %v1627 = vpack.c.b16 %v1556, %v1555
      %v1628 = vpack.c.b16 %v1558, %v1557
      %v1629 = vpack.c.b16 %v1560, %v1559
      %v1630 = vpack.c.b16 %v1562, %v1561
      %v1631 = vpack.c.b16 %v1564, %v1563
      %v1632 = vpack.c.b16 %v1566, %v1565
      %v1633 = vpack.c.b16 %v1568, %v1567
      %v1634 = vpack.c.b16 %v1570, %v1569
      %v1635 = vpack.c.b16 %v1572, %v1571
      %v1636 = vpack.c.b16 %v1574, %v1573
      %v1637 = vpack.c.b16 %v1576, %v1575
      %v1638 = vpack.c.b16 %v1578, %v1577
      %v1639 = vpack.c.b16 %v1580, %v1579
      %v1640 = vpack.c.b16 %v1582, %v1581
      %v1641 = vpack.c.b16 %v1584, %v1583
      %v1642 = vpack.c.b16 %v1586, %v1585
      %v1643 = vpack.c.b16 %v1588, %v1587
      %v1644 = vpack.c.b16 %v1590, %v1589
      %v1645 = vpack.c.b16 %v1592, %v1591
      %v1646 = vpack.c.b16 %v1594, %v1593
      %v1647 = vpack.c.b16 %v1596, %v1595
      %v1648 = vpack.c.b16 %v1598, %v1597
      %v1649 = vpack.c.b16 %v1600, %v1599
      %v1650 = vpack.c.b16 %v1602, %v1601
      %1699 = vmatprep.subr.bf16.mxu0 0
      %1700 = vmatpush1.bf16.msra.mxu0 %v1603
      %1701 = vmatprep.subr.bf16.mxu0 0
      %1702 = vmatpush1.bf16.msra.mxu0 %v1604
      %1703 = vmatprep.subr.bf16.mxu0 0
      %1704 = vmatpush1.bf16.msra.mxu0 %v1605
      %1705 = vmatprep.subr.bf16.mxu0 0
      %1706 = vmatpush1.bf16.msra.mxu0 %v1606
      %1707 = vmatprep.subr.bf16.mxu0 0
      %1708 = vmatpush1.bf16.msra.mxu0 %v1607
      %1709 = vmatprep.subr.bf16.mxu0 0
      %1710 = vmatpush1.bf16.msra.mxu0 %v1608
      %1711 = vmatprep.subr.bf16.mxu0 0
      %1712 = vmatpush1.bf16.msra.mxu0 %v1609
      %1713 = vmatprep.subr.bf16.mxu0 0
      %1714 = vmatpush1.bf16.msra.mxu0 %v1610
      %1715 = vmatprep.subr.bf16.mxu0 0
      %1716 = vmatpush1.bf16.msra.mxu0 %v1611
      %1717 = vmatprep.subr.bf16.mxu0 0
      %1718 = vmatpush1.bf16.msra.mxu0 %v1612
      %1719 = vmatprep.subr.bf16.mxu0 0
      %1720 = vmatpush1.bf16.msra.mxu0 %v1613
      %1721 = vmatprep.subr.bf16.mxu0 0
      %1722 = vmatpush1.bf16.msra.mxu0 %v1614
      %1723 = vmatprep.subr.bf16.mxu0 0
      %1724 = vmatpush1.bf16.msra.mxu0 %v1615
      %1725 = vmatprep.subr.bf16.mxu0 0
      %1726 = vmatpush1.bf16.msra.mxu0 %v1616
      %1727 = vmatprep.subr.bf16.mxu0 0
      %1728 = vmatpush1.bf16.msra.mxu0 %v1617
      %1729 = vmatprep.subr.bf16.mxu0 0
      %1730 = vmatpush1.bf16.msra.mxu0 %v1618
      %1731 = vmatprep.mubr.bf16.mxu0 %v1310
      %1732 = vmatmul.mubr.bf16.gmra.mrb[0].mxu0 %v1309
      %v1733 = vpop.f32.mrb[0].mxu0
      %v1734 = vadd.f32 0.0, %v1733
      %v1735 = vpop.f32.mrb[0].mxu0
      %v1736 = vpop.f32.mrb[0].mxu0
      %v1737 = vadd.f32 0.0, %v1736
      %v1738 = vpop.f32.mrb[0].mxu0
      %1739 = vdwg.mxu0
      %1740 = vmatprep.subr.bf16.mxu0 0
      %1741 = vmatpush1.bf16.msra.mxu0 %v1619
      %1742 = vmatprep.subr.bf16.mxu0 0
      %1743 = vmatpush1.bf16.msra.mxu0 %v1620
      %1744 = vmatprep.subr.bf16.mxu0 0
      %1745 = vmatpush1.bf16.msra.mxu0 %v1621
      %1746 = vmatprep.subr.bf16.mxu0 0
      %1747 = vmatpush1.bf16.msra.mxu0 %v1622
      %1748 = vmatprep.subr.bf16.mxu0 0
      %1749 = vmatpush1.bf16.msra.mxu0 %v1623
      %1750 = vmatprep.subr.bf16.mxu0 0
      %1751 = vmatpush1.bf16.msra.mxu0 %v1624
      %1752 = vmatprep.subr.bf16.mxu0 0
      %1753 = vmatpush1.bf16.msra.mxu0 %v1625
      %1754 = vmatprep.subr.bf16.mxu0 0
      %1755 = vmatpush1.bf16.msra.mxu0 %v1626
      %1756 = vmatprep.subr.bf16.mxu0 0
      %1757 = vmatpush1.bf16.msra.mxu0 %v1627
      %1758 = vmatprep.subr.bf16.mxu0 0
      %1759 = vmatpush1.bf16.msra.mxu0 %v1628
      %1760 = vmatprep.subr.bf16.mxu0 0
      %1761 = vmatpush1.bf16.msra.mxu0 %v1629
      %1762 = vmatprep.subr.bf16.mxu0 0
      %1763 = vmatpush1.bf16.msra.mxu0 %v1630
      %1764 = vmatprep.subr.bf16.mxu0 0
      %1765 = vmatpush1.bf16.msra.mxu0 %v1631
      %1766 = vmatprep.subr.bf16.mxu0 0
      %1767 = vmatpush1.bf16.msra.mxu0 %v1632
      %1768 = vmatprep.subr.bf16.mxu0 0
      %1769 = vmatpush1.bf16.msra.mxu0 %v1633
      %1770 = vmatprep.subr.bf16.mxu0 0
      %1771 = vmatpush1.bf16.msra.mxu0 %v1634
      %1772 = vmatprep.mubr.bf16.mxu0 %v1312
      %1773 = vmatmul.mubr.bf16.gmra.mrb[0].mxu0 %v1311
      %v1774 = vpop.f32.mrb[0].mxu0
      %v1775 = vadd.f32 %v1734, %v1774
      %v1776 = vpop.f32.mrb[0].mxu0
      %v1777 = vpop.f32.mrb[0].mxu0
      %v1778 = vadd.f32 %v1737, %v1777
      %v1779 = vpop.f32.mrb[0].mxu0
      %1780 = vdwg.mxu0
      %1781 = vmatprep.subr.bf16.mxu0 0
      %1782 = vmatpush1.bf16.msra.mxu0 %v1635
      %1783 = vmatprep.subr.bf16.mxu0 0
      %1784 = vmatpush1.bf16.msra.mxu0 %v1636
      %1785 = vmatprep.subr.bf16.mxu0 0
      %1786 = vmatpush1.bf16.msra.mxu0 %v1637
      %1787 = vmatprep.subr.bf16.mxu0 0
      %1788 = vmatpush1.bf16.msra.mxu0 %v1638
      %1789 = vmatprep.subr.bf16.mxu0 0
      %1790 = vmatpush1.bf16.msra.mxu0 %v1639
      %1791 = vmatprep.subr.bf16.mxu0 0
      %1792 = vmatpush1.bf16.msra.mxu0 %v1640
      %1793 = vmatprep.subr.bf16.mxu0 0
      %1794 = vmatpush1.bf16.msra.mxu0 %v1641
      %1795 = vmatprep.subr.bf16.mxu0 0
      %1796 = vmatpush1.bf16.msra.mxu0 %v1642
      %1797 = vmatprep.subr.bf16.mxu0 0
      %1798 = vmatpush1.bf16.msra.mxu0 %v1643
      %1799 = vmatprep.subr.bf16.mxu0 0
      %1800 = vmatpush1.bf16.msra.mxu0 %v1644
      %1801 = vmatprep.subr.bf16.mxu0 0
      %1802 = vmatpush1.bf16.msra.mxu0 %v1645
      %1803 = vmatprep.subr.bf16.mxu0 0
      %1804 = vmatpush1.bf16.msra.mxu0 %v1646
      %1805 = vmatprep.subr.bf16.mxu0 0
      %1806 = vmatpush1.bf16.msra.mxu0 %v1647
      %1807 = vmatprep.subr.bf16.mxu0 0
      %1808 = vmatpush1.bf16.msra.mxu0 %v1648
      %1809 = vmatprep.subr.bf16.mxu0 0
      %1810 = vmatpush1.bf16.msra.mxu0 %v1649
      %1811 = vmatprep.subr.bf16.mxu0 0
      %1812 = vmatpush1.bf16.msra.mxu0 %v1650
      %1813 = vmatprep.mubr.bf16.mxu0 %v1314
      %1814 = vmatmul.mubr.bf16.gmra.mrb[0].mxu0 %v1313
      %v1815 = vpop.f32.mrb[0].mxu0
      %v1816 = vadd.f32 %v1775, %v1815
      %v1817 = vpop.f32.mrb[0].mxu0
      %v1818 = vpop.f32.mrb[0].mxu0
      %v1819 = vadd.f32 %v1778, %v1818
      %v1820 = vpop.f32.mrb[0].mxu0
      %1821 = vdwg.mxu0
      %v1950 = vunpack.c.l.b16 %v1181
      %v1951 = vunpack.c.l.b16 %v1182
      %v1952 = vunpack.c.l.b16 %v1183
      %v1953 = vunpack.c.l.b16 %v1184
      %v1954 = vunpack.c.l.b16 %v1185
      %v1955 = vunpack.c.l.b16 %v1186
      %v1956 = vunpack.c.l.b16 %v1187
      %v1957 = vunpack.c.l.b16 %v1188
      %v1958 = vunpack.c.l.b16 %v1189
      %v1959 = vunpack.c.l.b16 %v1190
      %v1960 = vunpack.c.l.b16 %v1191
      %v1961 = vunpack.c.l.b16 %v1192
      %v1962 = vunpack.c.l.b16 %v1193
      %v1963 = vunpack.c.l.b16 %v1194
      %v1964 = vunpack.c.l.b16 %v1195
      %v1965 = vunpack.c.l.b16 %v1196
      %v1966 = vunpack.c.l.b16 %v1197
      %v1967 = vunpack.c.l.b16 %v1198
      %v1968 = vunpack.c.l.b16 %v1199
      %v1969 = vunpack.c.l.b16 %v1200
      %v1970 = vunpack.c.l.b16 %v1201
      %v1971 = vunpack.c.l.b16 %v1202
      %v1972 = vunpack.c.l.b16 %v1203
      %v1973 = vunpack.c.l.b16 %v1204
      %v1974 = vunpack.c.l.b16 %v1205
      %v1975 = vunpack.c.l.b16 %v1206
      %v1976 = vunpack.c.l.b16 %v1207
      %v1977 = vunpack.c.l.b16 %v1208
      %v1978 = vunpack.c.l.b16 %v1209
      %v1979 = vunpack.c.l.b16 %v1210
      %v1980 = vunpack.c.l.b16 %v1211
      %v1981 = vunpack.c.l.b16 %v1212
      %v1982 = vunpack.c.l.b16 %v1213
      %v1983 = vunpack.c.l.b16 %v1214
      %v1984 = vunpack.c.l.b16 %v1215
      %v1985 = vunpack.c.l.b16 %v1216
      %v1986 = vunpack.c.l.b16 %v1217
      %v1987 = vunpack.c.l.b16 %v1218
      %v1988 = vunpack.c.l.b16 %v1219
      %v1989 = vunpack.c.l.b16 %v1220
      %v1990 = vunpack.c.l.b16 %v1221
      %v1991 = vunpack.c.l.b16 %v1222
      %v1992 = vunpack.c.l.b16 %v1223
      %v1993 = vunpack.c.l.b16 %v1224
      %v1994 = vunpack.c.l.b16 %v1225
      %v1995 = vunpack.c.l.b16 %v1226
      %v1996 = vunpack.c.l.b16 %v1227
      %v1997 = vunpack.c.l.b16 %v1228
      %v1998 = vunpack.c.l.b16 %v1229
      %v1999 = vunpack.c.l.b16 %v1230
      %v2000 = vunpack.c.l.b16 %v1231
      %v2001 = vunpack.c.l.b16 %v1232
      %v2002 = vunpack.c.l.b16 %v1233
      %v2003 = vunpack.c.l.b16 %v1234
      %v2004 = vunpack.c.l.b16 %v1235
      %v2005 = vunpack.c.l.b16 %v1236
      %v2006 = vunpack.c.l.b16 %v1237
      %v2007 = vunpack.c.l.b16 %v1238
      %v2008 = vunpack.c.l.b16 %v1239
      %v2009 = vunpack.c.l.b16 %v1240
      %v2010 = vunpack.c.l.b16 %v1241
      %v2011 = vunpack.c.l.b16 %v1242
      %v2012 = vunpack.c.l.b16 %v1243
      %v2013 = vunpack.c.l.b16 %v1244
      %v2014 = vunpack.c.l.b16 %v1245
      %v2015 = vunpack.c.l.b16 %v1246
      %v2016 = vunpack.c.l.b16 %v1247
      %v2017 = vunpack.c.l.b16 %v1248
      %v2018 = vunpack.c.l.b16 %v1249
      %v2019 = vunpack.c.l.b16 %v1250
      %v2020 = vunpack.c.l.b16 %v1251
      %v2021 = vunpack.c.l.b16 %v1252
      %v2022 = vunpack.c.l.b16 %v1253
      %v2023 = vunpack.c.l.b16 %v1254
      %v2024 = vunpack.c.l.b16 %v1255
      %v2025 = vunpack.c.l.b16 %v1256
      %v2026 = vunpack.c.l.b16 %v1257
      %v2027 = vunpack.c.l.b16 %v1258
      %v2028 = vunpack.c.l.b16 %v1259
      %v2029 = vunpack.c.l.b16 %v1260
      %v2030 = vunpack.c.l.b16 %v1261
      %v2031 = vunpack.c.l.b16 %v1262
      %v2032 = vunpack.c.l.b16 %v1263
      %v2033 = vunpack.c.l.b16 %v1264
      %v2034 = vunpack.c.l.b16 %v1265
      %v2035 = vunpack.c.l.b16 %v1266
      %v2036 = vunpack.c.l.b16 %v1267
      %v2037 = vunpack.c.l.b16 %v1268
      %v2038 = vunpack.c.l.b16 %v1269
      %v2039 = vunpack.c.l.b16 %v1270
      %v2040 = vunpack.c.l.b16 %v1271
      %v2041 = vunpack.c.l.b16 %v1272
      %v2042 = vunpack.c.l.b16 %v1273
      %v2043 = vunpack.c.l.b16 %v1274
      %v2044 = vunpack.c.l.b16 %v1275
      %v2045 = vunpack.c.l.b16 %v1276
      %v2046 = vunpack.c.l.b16 %v1277
      %v2047 = vunpack.c.l.b16 %v1278
      %v2048 = vunpack.c.l.b16 %v1279
      %v2049 = vunpack.c.l.b16 %v1280
      %v2050 = vunpack.c.l.b16 %v1281
      %v2051 = vunpack.c.l.b16 %v1282
      %v2052 = vunpack.c.l.b16 %v1283
      %v2053 = vunpack.c.l.b16 %v1284
      %v2054 = vunpack.c.l.b16 %v1285
      %v2055 = vunpack.c.l.b16 %v1286
      %v2056 = vunpack.c.l.b16 %v1287
      %v2057 = vunpack.c.l.b16 %v1288
      %v2058 = vunpack.c.l.b16 %v1289
      %v2059 = vunpack.c.l.b16 %v1290
      %v2060 = vunpack.c.l.b16 %v1291
      %v2061 = vunpack.c.l.b16 %v1292
      %v2062 = vunpack.c.l.b16 %v1293
      %v2063 = vunpack.c.l.b16 %v1294
      %v2064 = vunpack.c.l.b16 %v1295
      %v2065 = vunpack.c.l.b16 %v1296
      %v2066 = vunpack.c.l.b16 %v1297
      %v2067 = vunpack.c.l.b16 %v1298
      %v2068 = vunpack.c.l.b16 %v1299
      %v2069 = vunpack.c.l.b16 %v1300
      %v2070 = vunpack.c.l.b16 %v1301
      %v2071 = vunpack.c.l.b16 %v1302
      %v2072 = vunpack.c.l.b16 %v1303
      %v2073 = vunpack.c.l.b16 %v1304
      %v2074 = vunpack.c.l.b16 %v1305
      %v2075 = vunpack.c.l.b16 %v1306
      %v2076 = vunpack.c.l.b16 %v1307
      %v2077 = vunpack.c.l.b16 %v1308
      %v2078 = vpack.c.b16 %v1951, %v1950
      %v2079 = vpack.c.b16 %v1953, %v1952
      %v2080 = vpack.c.b16 %v1955, %v1954
      %v2081 = vpack.c.b16 %v1957, %v1956
      %v2082 = vpack.c.b16 %v1959, %v1958
      %v2083 = vpack.c.b16 %v1961, %v1960
      %v2084 = vpack.c.b16 %v1963, %v1962
      %v2085 = vpack.c.b16 %v1965, %v1964
      %v2086 = vpack.c.b16 %v1967, %v1966
      %v2087 = vpack.c.b16 %v1969, %v1968
      %v2088 = vpack.c.b16 %v1971, %v1970
      %v2089 = vpack.c.b16 %v1973, %v1972
      %v2090 = vpack.c.b16 %v1975, %v1974
      %v2091 = vpack.c.b16 %v1977, %v1976
      %v2092 = vpack.c.b16 %v1979, %v1978
      %v2093 = vpack.c.b16 %v1981, %v1980
      %v2094 = vpack.c.b16 %v1983, %v1982
      %v2095 = vpack.c.b16 %v1985, %v1984
      %v2096 = vpack.c.b16 %v1987, %v1986
      %v2097 = vpack.c.b16 %v1989, %v1988
      %v2098 = vpack.c.b16 %v1991, %v1990
      %v2099 = vpack.c.b16 %v1993, %v1992
      %v2100 = vpack.c.b16 %v1995, %v1994
      %v2101 = vpack.c.b16 %v1997, %v1996
      %v2102 = vpack.c.b16 %v1999, %v1998
      %v2103 = vpack.c.b16 %v2001, %v2000
      %v2104 = vpack.c.b16 %v2003, %v2002
      %v2105 = vpack.c.b16 %v2005, %v2004
      %v2106 = vpack.c.b16 %v2007, %v2006
      %v2107 = vpack.c.b16 %v2009, %v2008
      %v2108 = vpack.c.b16 %v2011, %v2010
      %v2109 = vpack.c.b16 %v2013, %v2012
      %v2110 = vpack.c.b16 %v2015, %v2014
      %v2111 = vpack.c.b16 %v2017, %v2016
      %v2112 = vpack.c.b16 %v2019, %v2018
      %v2113 = vpack.c.b16 %v2021, %v2020
      %v2114 = vpack.c.b16 %v2023, %v2022
      %v2115 = vpack.c.b16 %v2025, %v2024
      %v2116 = vpack.c.b16 %v2027, %v2026
      %v2117 = vpack.c.b16 %v2029, %v2028
      %v2118 = vpack.c.b16 %v2031, %v2030
      %v2119 = vpack.c.b16 %v2033, %v2032
      %v2120 = vpack.c.b16 %v2035, %v2034
      %v2121 = vpack.c.b16 %v2037, %v2036
      %v2122 = vpack.c.b16 %v2039, %v2038
      %v2123 = vpack.c.b16 %v2041, %v2040
      %v2124 = vpack.c.b16 %v2043, %v2042
      %v2125 = vpack.c.b16 %v2045, %v2044
      %v2126 = vpack.c.b16 %v2047, %v2046
      %v2127 = vpack.c.b16 %v2049, %v2048
      %v2128 = vpack.c.b16 %v2051, %v2050
      %v2129 = vpack.c.b16 %v2053, %v2052
      %v2130 = vpack.c.b16 %v2055, %v2054
      %v2131 = vpack.c.b16 %v2057, %v2056
      %v2132 = vpack.c.b16 %v2059, %v2058
      %v2133 = vpack.c.b16 %v2061, %v2060
      %v2134 = vpack.c.b16 %v2063, %v2062
      %v2135 = vpack.c.b16 %v2065, %v2064
      %v2136 = vpack.c.b16 %v2067, %v2066
      %v2137 = vpack.c.b16 %v2069, %v2068
      %v2138 = vpack.c.b16 %v2071, %v2070
      %v2139 = vpack.c.b16 %v2073, %v2072
      %v2140 = vpack.c.b16 %v2075, %v2074
      %v2141 = vpack.c.b16 %v2077, %v2076
      %2206 = vmatprep.subr.bf16.mxu0 0
      %2207 = vmatpush1.bf16.msra.mxu0 %v2078
      %2208 = vmatprep.subr.bf16.mxu0 0
      %2209 = vmatpush1.bf16.msra.mxu0 %v2079
      %2210 = vmatprep.subr.bf16.mxu0 0
      %2211 = vmatpush1.bf16.msra.mxu0 %v2080
      %2212 = vmatprep.subr.bf16.mxu0 0
      %2213 = vmatpush1.bf16.msra.mxu0 %v2081
      %2214 = vmatprep.subr.bf16.mxu0 0
      %2215 = vmatpush1.bf16.msra.mxu0 %v2082
      %2216 = vmatprep.subr.bf16.mxu0 0
      %2217 = vmatpush1.bf16.msra.mxu0 %v2083
      %2218 = vmatprep.subr.bf16.mxu0 0
      %2219 = vmatpush1.bf16.msra.mxu0 %v2084
      %2220 = vmatprep.subr.bf16.mxu0 0
      %2221 = vmatpush1.bf16.msra.mxu0 %v2085
      %2222 = vmatprep.subr.bf16.mxu0 0
      %2223 = vmatpush1.bf16.msra.mxu0 %v2086
      %2224 = vmatprep.subr.bf16.mxu0 0
      %2225 = vmatpush1.bf16.msra.mxu0 %v2087
      %2226 = vmatprep.subr.bf16.mxu0 0
      %2227 = vmatpush1.bf16.msra.mxu0 %v2088
      %2228 = vmatprep.subr.bf16.mxu0 0
      %2229 = vmatpush1.bf16.msra.mxu0 %v2089
      %2230 = vmatprep.subr.bf16.mxu0 0
      %2231 = vmatpush1.bf16.msra.mxu0 %v2090
      %2232 = vmatprep.subr.bf16.mxu0 0
      %2233 = vmatpush1.bf16.msra.mxu0 %v2091
      %2234 = vmatprep.subr.bf16.mxu0 0
      %2235 = vmatpush1.bf16.msra.mxu0 %v2092
      %2236 = vmatprep.subr.bf16.mxu0 0
      %2237 = vmatpush1.bf16.msra.mxu0 %v2093
      %2238 = vmatprep.mubr.bf16.mxu0 %v1174
      %2239 = vmatmul.mubr.bf16.gmra.mrb[0].mxu0 %v1173
      %v2240 = vpop.f32.mrb[0].mxu0
      %v2241 = vadd.f32 %v1816, %v2240
      %v2242 = vpop.f32.mrb[0].mxu0
      %v2243 = vpop.f32.mrb[0].mxu0
      %v2244 = vadd.f32 %v1819, %v2243
      %v2245 = vpop.f32.mrb[0].mxu0
      %2246 = vdwg.mxu0
      %2247 = vmatprep.subr.bf16.mxu0 0
      %2248 = vmatpush1.bf16.msra.mxu0 %v2094
      %2249 = vmatprep.subr.bf16.mxu0 0
      %2250 = vmatpush1.bf16.msra.mxu0 %v2095
      %2251 = vmatprep.subr.bf16.mxu0 0
      %2252 = vmatpush1.bf16.msra.mxu0 %v2096
      %2253 = vmatprep.subr.bf16.mxu0 0
      %2254 = vmatpush1.bf16.msra.mxu0 %v2097
      %2255 = vmatprep.subr.bf16.mxu0 0
      %2256 = vmatpush1.bf16.msra.mxu0 %v2098
      %2257 = vmatprep.subr.bf16.mxu0 0
      %2258 = vmatpush1.bf16.msra.mxu0 %v2099
      %2259 = vmatprep.subr.bf16.mxu0 0
      %2260 = vmatpush1.bf16.msra.mxu0 %v2100
      %2261 = vmatprep.subr.bf16.mxu0 0
      %2262 = vmatpush1.bf16.msra.mxu0 %v2101
      %2263 = vmatprep.subr.bf16.mxu0 0
      %2264 = vmatpush1.bf16.msra.mxu0 %v2102
      %2265 = vmatprep.subr.bf16.mxu0 0
      %2266 = vmatpush1.bf16.msra.mxu0 %v2103
      %2267 = vmatprep.subr.bf16.mxu0 0
      %2268 = vmatpush1.bf16.msra.mxu0 %v2104
      %2269 = vmatprep.subr.bf16.mxu0 0
      %2270 = vmatpush1.bf16.msra.mxu0 %v2105
      %2271 = vmatprep.subr.bf16.mxu0 0
      %2272 = vmatpush1.bf16.msra.mxu0 %v2106
      %2273 = vmatprep.subr.bf16.mxu0 0
      %2274 = vmatpush1.bf16.msra.mxu0 %v2107
      %2275 = vmatprep.subr.bf16.mxu0 0
      %2276 = vmatpush1.bf16.msra.mxu0 %v2108
      %2277 = vmatprep.subr.bf16.mxu0 0
      %2278 = vmatpush1.bf16.msra.mxu0 %v2109
      %2279 = vmatprep.mubr.bf16.mxu0 %v1176
      %2280 = vmatmul.mubr.bf16.gmra.mrb[0].mxu0 %v1175
      %v2281 = vpop.f32.mrb[0].mxu0
      %v2282 = vadd.f32 %v2241, %v2281
      %v2283 = vpop.f32.mrb[0].mxu0
      %v2284 = vpop.f32.mrb[0].mxu0
      %v2285 = vadd.f32 %v2244, %v2284
      %v2286 = vpop.f32.mrb[0].mxu0
      %2287 = vdwg.mxu0
      %2288 = vmatprep.subr.bf16.mxu0 0
      %2289 = vmatpush1.bf16.msra.mxu0 %v2110
      %2290 = vmatprep.subr.bf16.mxu0 0
      %2291 = vmatpush1.bf16.msra.mxu0 %v2111
      %2292 = vmatprep.subr.bf16.mxu0 0
      %2293 = vmatpush1.bf16.msra.mxu0 %v2112
      %2294 = vmatprep.subr.bf16.mxu0 0
      %2295 = vmatpush1.bf16.msra.mxu0 %v2113
      %2296 = vmatprep.subr.bf16.mxu0 0
      %2297 = vmatpush1.bf16.msra.mxu0 %v2114
      %2298 = vmatprep.subr.bf16.mxu0 0
      %2299 = vmatpush1.bf16.msra.mxu0 %v2115
      %2300 = vmatprep.subr.bf16.mxu0 0
      %2301 = vmatpush1.bf16.msra.mxu0 %v2116
      %2302 = vmatprep.subr.bf16.mxu0 0
      %2303 = vmatpush1.bf16.msra.mxu0 %v2117
      %2304 = vmatprep.subr.bf16.mxu0 0
      %2305 = vmatpush1.bf16.msra.mxu0 %v2118
      %2306 = vmatprep.subr.bf16.mxu0 0
      %2307 = vmatpush1.bf16.msra.mxu0 %v2119
      %2308 = vmatprep.subr.bf16.mxu0 0
      %2309 = vmatpush1.bf16.msra.mxu0 %v2120
      %2310 = vmatprep.subr.bf16.mxu0 0
      %2311 = vmatpush1.bf16.msra.mxu0 %v2121
      %2312 = vmatprep.subr.bf16.mxu0 0
      %2313 = vmatpush1.bf16.msra.mxu0 %v2122
      %2314 = vmatprep.subr.bf16.mxu0 0
      %2315 = vmatpush1.bf16.msra.mxu0 %v2123
      %2316 = vmatprep.subr.bf16.mxu0 0
      %2317 = vmatpush1.bf16.msra.mxu0 %v2124
      %2318 = vmatprep.subr.bf16.mxu0 0
      %2319 = vmatpush1.bf16.msra.mxu0 %v2125
      %2320 = vmatprep.mubr.bf16.mxu0 %v1178
      %2321 = vmatmul.mubr.bf16.gmra.mrb[0].mxu0 %v1177
      %v2322 = vpop.f32.mrb[0].mxu0
      %v2323 = vadd.f32 %v2282, %v2322
      %v2324 = vpop.f32.mrb[0].mxu0
      %v2325 = vpop.f32.mrb[0].mxu0
      %v2326 = vadd.f32 %v2285, %v2325
      %v2327 = vpop.f32.mrb[0].mxu0
      %2328 = vdwg.mxu0
      %2329 = vmatprep.subr.bf16.mxu0 0
      %2330 = vmatpush1.bf16.msra.mxu0 %v2126
      %2331 = vmatprep.subr.bf16.mxu0 0
      %2332 = vmatpush1.bf16.msra.mxu0 %v2127
      %2333 = vmatprep.subr.bf16.mxu0 0
      %2334 = vmatpush1.bf16.msra.mxu0 %v2128
      %2335 = vmatprep.subr.bf16.mxu0 0
      %2336 = vmatpush1.bf16.msra.mxu0 %v2129
      %2337 = vmatprep.subr.bf16.mxu0 0
      %2338 = vmatpush1.bf16.msra.mxu0 %v2130
      %2339 = vmatprep.subr.bf16.mxu0 0
      %2340 = vmatpush1.bf16.msra.mxu0 %v2131
      %2341 = vmatprep.subr.bf16.mxu0 0
      %2342 = vmatpush1.bf16.msra.mxu0 %v2132
      %2343 = vmatprep.subr.bf16.mxu0 0
      %2344 = vmatpush1.bf16.msra.mxu0 %v2133
      %2345 = vmatprep.subr.bf16.mxu0 0
      %2346 = vmatpush1.bf16.msra.mxu0 %v2134
      %2347 = vmatprep.subr.bf16.mxu0 0
      %2348 = vmatpush1.bf16.msra.mxu0 %v2135
      %2349 = vmatprep.subr.bf16.mxu0 0
      %2350 = vmatpush1.bf16.msra.mxu0 %v2136
      %2351 = vmatprep.subr.bf16.mxu0 0
      %2352 = vmatpush1.bf16.msra.mxu0 %v2137
      %2353 = vmatprep.subr.bf16.mxu0 0
      %2354 = vmatpush1.bf16.msra.mxu0 %v2138
      %2355 = vmatprep.subr.bf16.mxu0 0
      %2356 = vmatpush1.bf16.msra.mxu0 %v2139
      %2357 = vmatprep.subr.bf16.mxu0 0
      %2358 = vmatpush1.bf16.msra.mxu0 %v2140
      %2359 = vmatprep.subr.bf16.mxu0 0
      %2360 = vmatpush1.bf16.msra.mxu0 %v2141
      %2361 = vmatprep.mubr.bf16.mxu0 %v1180
      %2362 = vmatmul.mubr.bf16.gmra.mrb[0].mxu0 %v1179
      %v2363 = vpop.f32.mrb[0].mxu0
      %v2364 = vadd.f32 %v2323, %v2363
      %v2365 = vpop.f32.mrb[0].mxu0
      %v2366 = vpop.f32.mrb[0].mxu0
      %v2367 = vadd.f32 %v2326, %v2366
      %v2368 = vpop.f32.mrb[0].mxu0
      %2369 = vdwg.mxu0
      %v2370 = vld [vmem:[%s8] sm:$0x1]
      %v2372 = vlaneseq
      %v2373 = vshrl.u32 %v2372, 7
      %v2374 = vsub.s32 0, %v2373
      %v2375 = vrot.slane %v2370, %v2374
      %v2377 = vadd.f32 %v2364, %v2375
      %v2378 = vadd.f32 %v2367, %v2375
      %2379 = vst [vmem:[#allocation14] sm:$0xff] %v2377
      %2380 = vst [vmem:[#allocation14 + $0x8] sm:$0xff] %v2378
    $region69: #{tpu_custom_call.1} parent=1 // pred_fallthru
      _
    // Predicated region
    $region70: #{tpu_custom_call.1} parent=1 // pred_check
      _
    $region71: #{tpu_custom_call.1} parent=1 // pred_check_branch
      %2382 = sbr.rel (0) target = $region73
    $region72: #{tpu_custom_call.1} parent=1 // pred_region
      %s2384 = ssub.s32 256, 256
      %2385 = vsyncadd [#allocation5], %s2384
      %s2386 = sshll.u32 [#allocation14], 4
      %s2387 = int_to_ptr.vmem [resolvable:$true] %s2386
      %2392 = dma.vmem_to_hbm [thread:$0]  %s2387, 256, %s9, [#allocation5], 128, 128, 8
    $region73: #{tpu_custom_call.1} parent=1 // pred_fallthru
      _
    // Predicated region
    $region74: #{tpu_custom_call.1} parent=1 // pred_check
      _
    $region75: #{tpu_custom_call.1} parent=1 // pred_check_branch
      %2394 = sbr.rel (0) target = $region77
    $region76: #{tpu_custom_call.1} parent=1 // pred_region
      %s2396 = ssub.s32 3584, 3584
      %2397 = vsyncadd [#allocation16], %s2396
      %s2398 = sshll.u32 [#allocation15], 4
      %s2399 = int_to_ptr.vmem [resolvable:$true] %s2398
      %2404 = dma.vmem_to_hbm [thread:$0]  %s2399, 3584, %s10, [#allocation16], 1792, 1792, 112
    $region77: #{tpu_custom_call.1} parent=1 // pred_fallthru
      _
    // Predicated region
    $region78: #{tpu_custom_call.1} parent=1 // pred_check
      _
    $region79: #{tpu_custom_call.1} parent=1 // pred_check_branch
      %2406 = sbr.rel (0) target = $region81
    $region80: #{tpu_custom_call.1} parent=1 // pred_region
      %2407 = dma.done [#allocation5], 256
    $region81: #{tpu_custom_call.1} parent=1 // pred_fallthru
      _
    // Predicated region
    $region82: #{tpu_custom_call.1} parent=1 // pred_check
      _
    $region83: #{tpu_custom_call.1} parent=1 // pred_check_branch
      %2409 = sbr.rel (0) target = $region85
    $region84: #{tpu_custom_call.1} parent=1 // pred_region
      %2410 = dma.done [#allocation16], 3584
    $region85: #{tpu_custom_call.1} parent=1 // pred_fallthru
      _
    %2411 = vsyncpa [#allocation4], 1
    %2412 = vsyncpa [#allocation7], 1
    %2413 = vsyncpa [#allocation10], 1
    %2414 = vsyncpa [#allocation13], 1
    %2415 = vsyncpa [#allocation5], 1
    %2416 = vsyncpa [#allocation16], 1

</llo_original>
